<compile_context>
chip_gen: v6e
topology: v6e:2x2x1
jax: 0.10.0
libtpu: 0.0.40
codegen_flags: <defaults>
</compile_context>

<pallas_src>
import jax
import jax.numpy as jnp
from jax.experimental import pallas as pl
from jax.experimental.pallas import tpu as pltpu

# ----- toy config (mirrors the LlamaConfig fields used by the module) -----
B, S, H = 2, 8, 32                 # batch, seq_len, hidden_size
NUM_HEADS = 4                      # num_attention_heads
NUM_KV_HEADS = 2                   # num_key_value_heads
D = H // NUM_HEADS                 # head_dim = 8
REP = NUM_HEADS // NUM_KV_HEADS    # GQA repeat factor
I = 64                             # intermediate_size
EPS = 1e-5                         # rms_norm_eps
SCALING = D ** (-0.5)
BS = B * S                         # all (batch, seq) rows processed together
KVD = NUM_KV_HEADS * D             # 16
QKV_N = H + 2 * KVD                # fused q|k|v output width = 64
GU_N = 2 * I                       # fused gate|up output width = 128
VOCAB = 256                        # toy vocab for the end-to-end causal-LM check
N_LAYERS = 2
# attention_dropout = 0.0 -> dropout is identity (eval semantics).


def decoder_layer_kernel(x_ref, rope_ref, wqkv_ref, wo_ref, wgu_ref, wd_ref,
                         ln_ref, out_ref):
    f32, bf16 = jnp.float32, jnp.bfloat16

    x = x_ref[...].astype(f32)                          # (BS, H)
    ln = ln_ref[...]                                    # (2, H) f32
    ln1, ln2 = ln[0:1, :], ln[1:2, :]
    cos_t = rope_ref[0]                                 # (BS, H) cos tiled per head
    sin_l = rope_ref[1]                                 # -sin on first half of each head, 0 elsewhere
    sin_r = rope_ref[2]                                 # +sin on second half of each head, 0 elsewhere

    # ---- input RMSNorm (f32) ----
    var = jnp.mean(x * x, axis=-1, keepdims=True)
    xn = x * jax.lax.rsqrt(var + EPS) * ln1             # (BS, H)

    # ---- fused q|k|v projection: ONE bf16 MXU matmul, f32 accumulation ----
    qkv = jnp.dot(xn.astype(bf16), wqkv_ref[...],
                  preferred_element_type=f32)           # (BS, H + 2*KVD)
    q = qkv[:, :H]
    k = qkv[:, H:H + KVD]
    v = qkv[:, H + KVD:]

    # ---- RoPE on the packed per-head lane layout ----
    # rotate_half(t)*sin == shift_left(t, D/2) * (-sin on first half-lanes)
    #                     + shift_right(t, D/2) * (+sin on second half-lanes).
    # The +/-D/2 lane shifts are static concats (== pltpu.roll by +/-D//2); the
    # wrap-around lanes are killed by the zeros baked into sin_l / sin_r.
    def rope_apply(t, w):
        left = jnp.concatenate([t[:, D // 2:], t[:, :D // 2]], axis=-1)        # t[i + D/2]
        right = jnp.concatenate([t[:, -(D // 2):], t[:, :-(D // 2)]], axis=-1)  # t[i - D/2]
        return t * cos_t[:, :w] + left * sin_l[:, :w] + right * sin_r[:, :w]

    q = rope_apply(q, H) * SCALING                      # softmax scale folded into q
    k = rope_apply(k, KVD)

    # ---- GQA attention: only real per-(b,h) SxS blocks (no mask, no KV repeat) ----
    q3 = q.reshape(B, S, H)                             # leading split: free
    k3 = k.reshape(B, S, KVD)
    v3 = v.reshape(B, S, KVD)
    head_out = []
    # Unrolled over NUM_HEADS (4) to avoid an in-kernel (B,S,NH,D)->(B,NH,S,D)
    # relayout at this 8-lane head width; at real head_dim (128-multiple) use a
    # single (B*NH, S, D) flash-style batched einsum with a KV grid axis.
    for h in range(NUM_HEADS):
        g = h // REP                                    # kv head serving query head h
        qh = q3[:, :, h * D:(h + 1) * D].astype(bf16)   # (B, S, D)
        kh = k3[:, :, g * D:(g + 1) * D].astype(bf16)   # (B, S, D) -- no REP copies
        vh = v3[:, :, g * D:(g + 1) * D].astype(bf16)
        s = jnp.einsum('bqd,bkd->bqk', qh, kh,
                       preferred_element_type=f32)      # (B, S, S)
        s = s - jnp.max(s, axis=-1, keepdims=True)
        p = jnp.exp(s)
        p = p / jnp.sum(p, axis=-1, keepdims=True)      # exact divide: parity w/ f32 ref
        head_out.append(jnp.einsum('bqk,bkd->bqd', p.astype(bf16), vh,
                                   preferred_element_type=f32))
    attn = jnp.concatenate(head_out, axis=-1).reshape(BS, H)

    # ---- o_proj + residual ----
    x1 = x + jnp.dot(attn.astype(bf16), wo_ref[...], preferred_element_type=f32)

    # ---- post-attention RMSNorm ----
    var2 = jnp.mean(x1 * x1, axis=-1, keepdims=True)
    hn = x1 * jax.lax.rsqrt(var2 + EPS) * ln2

    # ---- SwiGLU MLP: fused gate|up matmul, f32 silu, bf16 down_proj ----
    gu = jnp.dot(hn.astype(bf16), wgu_ref[...], preferred_element_type=f32)   # (BS, 2I)
    gate, up = gu[:, :I], gu[:, I:]
    act = gate * jax.nn.sigmoid(gate) * up
    mlp = jnp.dot(act.astype(bf16), wd_ref[...], preferred_element_type=f32)  # (BS, H)

    out_ref[...] = (x1 + mlp).astype(out_ref.dtype)     # residual 2


# Advisory cost hint so XLA can schedule around the custom call.
_FLOPS = (2 * BS * H * QKV_N                 # fused qkv projection
          + NUM_HEADS * 4 * B * S * S * D    # per-head QK^T + P@V
          + 2 * BS * H * H                   # o_proj
          + 2 * BS * H * GU_N                # fused gate|up
          + 2 * BS * I * H)                  # down_proj
_TRANS = B * NUM_HEADS * S * S + BS * I + 2 * BS        # exp + sigmoid + rsqrt
_BYTES = (4 * (BS * H + 3 * BS * H + 2 * H + BS * H)    # f32: x, rope, ln, out
          + 2 * (H * QKV_N + H * H + H * GU_N + I * H))  # bf16 weights


@jax.jit
def llama_decoder_layer(x, cos, sin, params):
    """One LlamaDecoderLayer forward via the fused Pallas kernel."""
    wq, wk, wv, wo, wg, wu, wd, ln1, ln2 = params
    bf16 = jnp.bfloat16

    x2 = x.reshape(BS, H).astype(jnp.float32)

    # RoPE tables tiled to the packed per-head layout; rotate_half sign folded
    # in and split into "left-shift" / "right-shift" halves (zeros elsewhere).
    cos_t = jnp.tile(cos.reshape(BS, D), (1, NUM_HEADS))          # (BS, H)
    sin_t = jnp.tile(sin.reshape(BS, D), (1, NUM_HEADS))          # (BS, H)
    first = (jnp.arange(H) % D) < (D // 2)
    rope = jnp.stack([cos_t,
                      jnp.where(first, -sin_t, 0.0),
                      jnp.where(first, 0.0, sin_t)],
                     axis=0).astype(jnp.float32)                  # (3, BS, H)

    wqkv = jnp.concatenate([wq, wk, wv], axis=1).astype(bf16)     # (H, H + 2*KVD)
    wgu = jnp.concatenate([wg, wu], axis=1).astype(bf16)          # (H, 2I)
    ln = jnp.concatenate([ln1, ln2], axis=0).astype(jnp.float32)  # (2, H)

    vmem = pl.BlockSpec(memory_space=pltpu.MemorySpace.VMEM)
    out2 = pl.pallas_call(
        decoder_layer_kernel,
        out_shape=jax.ShapeDtypeStruct((BS, H), jnp.float32),
        in_specs=[vmem] * 7,
        out_specs=vmem,
        cost_estimate=pl.CostEstimate(flops=_FLOPS, transcendentals=_TRANS,
                                      bytes_accessed=_BYTES),
        # grid=() here: the whole layer fits in VMEM at toy shapes.  For real
        # Llama sizes: ("parallel", ..., "arbitrary") row/KV grid so v7x's two
        # TensorCores get work, 256-multiple MXU tiles, Buffered(2-3) weight
        # streaming, and a <~48 MiB live-VMEM budget on v7x (64 MiB physical).
    )(x2, rope, wqkv, wo.astype(bf16), wgu, wd.astype(bf16), ln)
    return out2.reshape(B, S, H)


# ---------------- pure-JAX reference (mirrors the torch forward, f32) ----------------
def reference_forward(x, cos, sin, params):
    wq, wk, wv, wo, wg, wu, wd, ln1, ln2 = params

    def rms(h, w):
        hf = h.astype(jnp.float32)
        var = jnp.mean(hf * hf, axis=-1, keepdims=True)
        return w[0] * (hf * jax.lax.rsqrt(var + EPS))

    def rot(t):
        d = t.shape[-1]
        return jnp.concatenate([-t[..., d // 2:], t[..., :d // 2]], axis=-1)

    xn = rms(x, ln1)
    q = (xn @ wq).reshape(B, S, NUM_HEADS, D)
    k = (xn @ wk).reshape(B, S, NUM_KV_HEADS, D)
    v = (xn @ wv).reshape(B, S, NUM_KV_HEADS, D)
    ce, se = cos[:, :, None, :], sin[:, :, None, :]
    q = q * ce + rot(q) * se
    k = k * ce + rot(k) * se
    q = q.transpose(0, 2, 1, 3)
    k = jnp.repeat(k.transpose(0, 2, 1, 3), REP, axis=1)
    v = jnp.repeat(v.transpose(0, 2, 1, 3), REP, axis=1)
    aw = jnp.einsum('bhqd,bhkd->bhqk', q, k) * SCALING
    aw = jax.nn.softmax(aw, axis=-1)
    ao = jnp.einsum('bhqk,bhkd->bhqd', aw, v)
    ao = ao.transpose(0, 2, 1, 3).reshape(B, S, H)
    x1 = x + ao @ wo
    hn = rms(x1, ln2)
    mlp = (jax.nn.silu(hn @ wg) * (hn @ wu)) @ wd
    return x1 + mlp


# ---------------- full (tiny) LlamaForCausalLM forward ----------------
def llama_causal_lm(input_ids, emb, layers, final_ln, cos, sin):
    # TODO(synk): nn.Embedding token gather and the tied lm_head vocab
    # projection stay in plain XLA; only the decoder layers run in Pallas.
    x = emb[input_ids]                                   # (B, S, H)
    for lp in layers:
        x = llama_decoder_layer(x, cos, sin, lp)
    var = jnp.mean(x * x, axis=-1, keepdims=True)
    hn = final_ln[0] * (x * jax.lax.rsqrt(var + EPS))    # final RMSNorm
    return hn @ emb.T                                    # tied lm_head


def reference_causal_lm(input_ids, emb, layers, final_ln, cos, sin):
    x = emb[input_ids]
    for lp in layers:
        x = reference_forward(x, cos, sin, lp)
    var = jnp.mean(x * x, axis=-1, keepdims=True)
    hn = final_ln[0] * (x * jax.lax.rsqrt(var + EPS))
    return hn @ emb.T


def make_layer_params(key):
    ks = jax.random.split(key, 7)
    scale = 0.05
    wq = scale * jax.random.normal(ks[0], (H, H), jnp.float32)
    wk = scale * jax.random.normal(ks[1], (H, KVD), jnp.float32)
    wv = scale * jax.random.normal(ks[2], (H, KVD), jnp.float32)
    wo = scale * jax.random.normal(ks[3], (H, H), jnp.float32)
    wg = scale * jax.random.normal(ks[4], (H, I), jnp.float32)
    wu = scale * jax.random.normal(ks[5], (H, I), jnp.float32)
    wd = scale * jax.random.normal(ks[6], (I, H), jnp.float32)
    ln1 = jnp.ones((1, H), jnp.float32)   # LlamaRMSNorm init: ones
    ln2 = jnp.ones((1, H), jnp.float32)
    return (wq, wk, wv, wo, wg, wu, wd, ln1, ln2)


def make_rope(seq_len, head_dim, base=10000.0):
    inv_freq = 1.0 / (base ** (jnp.arange(0, head_dim, 2, dtype=jnp.float32) / head_dim))
    pos = jnp.arange(seq_len, dtype=jnp.float32)
    freqs = jnp.outer(pos, inv_freq)                     # (S, D/2)
    emb = jnp.concatenate([freqs, freqs], axis=-1)       # (S, D)
    cos = jnp.broadcast_to(jnp.cos(emb)[None], (B, seq_len, head_dim))
    sin = jnp.broadcast_to(jnp.sin(emb)[None], (B, seq_len, head_dim))
    return cos, sin


if __name__ == "__main__":
    key = jax.random.PRNGKey(0)
    k_ids, k_emb, k_layers, kx = jax.random.split(key, 4)
    cos, sin = make_rope(S, D)

    # ---- single decoder-layer check (tight: bf16 MXU operands only) ----
    x = jax.random.normal(kx, (B, S, H), jnp.float32)
    layer_params = make_layer_params(jax.random.fold_in(k_layers, 0))
    out = jax.block_until_ready(llama_decoder_layer(x, cos, sin, layer_params))
    ref = reference_forward(x, cos, sin, layer_params)
    assert out.shape == (B, S, H)
    err1 = float(jnp.max(jnp.abs(out - ref)))
    assert bool(jnp.allclose(out, ref, atol=2e-2, rtol=2e-2)), f"layer max abs err = {err1}"

    # ---- end-to-end causal-LM check (looser: bf16 rounding compounds over
    #      N_LAYERS layers and the vocab projection; reference is pure f32) ----
    emb = jax.random.normal(k_emb, (VOCAB, H), jnp.float32)
    layers = [make_layer_params(jax.random.fold_in(k_layers, i)) for i in range(N_LAYERS)]
    final_ln = jnp.ones((1, H), jnp.float32)
    input_ids = jax.random.randint(k_ids, (B, S), 0, VOCAB)
    logits = jax.block_until_ready(llama_causal_lm(input_ids, emb, layers, final_ln, cos, sin))
    ref_logits = reference_causal_lm(input_ids, emb, layers, final_ln, cos, sin)
    assert logits.shape == (B, S, VOCAB)
    err2 = float(jnp.max(jnp.abs(logits - ref_logits)))
    assert bool(jnp.allclose(logits, ref_logits, atol=2e-1, rtol=2e-2)), f"logits max abs err = {err2}"

    print("KERNEL_OK")
</pallas_src>

<mosaic_0001>
module attributes {stable_mosaic.version = 11 : i64} {
  func.func @decoder_layer_kernel(%arg0: memref<16x32xf32, #tpu.memory_space<vmem>>, %arg1: memref<3x16x32xf32, #tpu.memory_space<vmem>>, %arg2: memref<32x64xbf16, #tpu.memory_space<vmem>>, %arg3: memref<32x32xbf16, #tpu.memory_space<vmem>>, %arg4: memref<32x128xbf16, #tpu.memory_space<vmem>>, %arg5: memref<64x32xbf16, #tpu.memory_space<vmem>>, %arg6: memref<2x32xf32, #tpu.memory_space<vmem>>, %arg7: memref<16x32xf32, #tpu.memory_space<vmem>>) attributes {dimension_semantics = [], scalar_prefetch = 0 : i64, scratch_operands = 0 : i64, tpu.core_type = #tpu.core_type<tc>} {
    %c0 = arith.constant 0 : index
    %c0_0 = arith.constant 0 : index
    %0 = vector.load %arg0[%c0, %c0_0] : memref<16x32xf32, #tpu.memory_space<vmem>>, vector<16x32xf32>
    %c0_1 = arith.constant 0 : index
    %c0_2 = arith.constant 0 : index
    %1 = vector.load %arg6[%c0_1, %c0_2] : memref<2x32xf32, #tpu.memory_space<vmem>>, vector<2x32xf32>
    %2 = vector.extract_strided_slice %1 {offsets = [0, 0], sizes = [1, 32], strides = [1, 1]} : vector<2x32xf32> to vector<1x32xf32>
    %3 = vector.extract_strided_slice %1 {offsets = [1, 0], sizes = [1, 32], strides = [1, 1]} : vector<2x32xf32> to vector<1x32xf32>
    %c0_3 = arith.constant 0 : index
    %c0_4 = arith.constant 0 : index
    %c0_5 = arith.constant 0 : index
    %4 = vector.load %arg1[%c0_3, %c0_4, %c0_5] : memref<3x16x32xf32, #tpu.memory_space<vmem>>, vector<1x16x32xf32>
    %5 = vector.shape_cast %4 : vector<1x16x32xf32> to vector<16x32xf32>
    %c1 = arith.constant 1 : index
    %c0_6 = arith.constant 0 : index
    %c0_7 = arith.constant 0 : index
    %6 = vector.load %arg1[%c1, %c0_6, %c0_7] : memref<3x16x32xf32, #tpu.memory_space<vmem>>, vector<1x16x32xf32>
    %7 = vector.shape_cast %6 : vector<1x16x32xf32> to vector<16x32xf32>
    %c2 = arith.constant 2 : index
    %c0_8 = arith.constant 0 : index
    %c0_9 = arith.constant 0 : index
    %8 = vector.load %arg1[%c2, %c0_8, %c0_9] : memref<3x16x32xf32, #tpu.memory_space<vmem>>, vector<1x16x32xf32>
    %9 = vector.shape_cast %8 : vector<1x16x32xf32> to vector<16x32xf32>
    %10 = arith.mulf %0, %0 : vector<16x32xf32>
    %cst = arith.constant dense<0.000000e+00> : vector<16xf32>
    %11 = vector.multi_reduction <add>, %10, %cst [1] : vector<16x32xf32> to vector<16xf32>
    %12 = vector.shape_cast %11 : vector<16xf32> to vector<16x1xf32>
    %cst_10 = arith.constant 3.200000e+01 : f32
    %13 = vector.broadcast %cst_10 : f32 to vector<16x1xf32>
    %14 = arith.divf %12, %13 : vector<16x1xf32>
    %cst_11 = arith.constant 9.99999974E-6 : f32
    %15 = vector.broadcast %cst_11 : f32 to vector<16x1xf32>
    %16 = arith.addf %14, %15 : vector<16x1xf32>
    %17 = math.rsqrt %16 : vector<16x1xf32>
    %18 = vector.broadcast %17 : vector<16x1xf32> to vector<16x32xf32>
    %19 = arith.mulf %0, %18 : vector<16x32xf32>
    %20 = vector.broadcast %2 : vector<1x32xf32> to vector<16x32xf32>
    %21 = arith.mulf %19, %20 : vector<16x32xf32>
    %22 = arith.truncf %21 : vector<16x32xf32> to vector<16x32xbf16>
    %c0_12 = arith.constant 0 : index
    %c0_13 = arith.constant 0 : index
    %23 = vector.load %arg2[%c0_12, %c0_13] : memref<32x64xbf16, #tpu.memory_space<vmem>>, vector<32x64xbf16>
    %cst_14 = arith.constant dense<0.000000e+00> : vector<16x64xf32>
    %24 = tpu.matmul %22, %23, %cst_14 {dimension_numbers = #tpu.dot_dimension_numbers<[1], [0], [0], [1], [0, 0, 1, 1], [], []>} : vector<16x32xbf16>, vector<32x64xbf16>, vector<16x64xf32> -> vector<16x64xf32>
    %25 = vector.extract_strided_slice %24 {offsets = [0, 0], sizes = [16, 32], strides = [1, 1]} : vector<16x64xf32> to vector<16x32xf32>
    %26 = vector.extract_strided_slice %24 {offsets = [0, 32], sizes = [16, 16], strides = [1, 1]} : vector<16x64xf32> to vector<16x16xf32>
    %27 = vector.extract_strided_slice %24 {offsets = [0, 48], sizes = [16, 16], strides = [1, 1]} : vector<16x64xf32> to vector<16x16xf32>
    %28 = vector.extract_strided_slice %25 {offsets = [0, 4], sizes = [16, 28], strides = [1, 1]} : vector<16x32xf32> to vector<16x28xf32>
    %29 = vector.extract_strided_slice %25 {offsets = [0, 0], sizes = [16, 4], strides = [1, 1]} : vector<16x32xf32> to vector<16x4xf32>
    %30 = tpu.concatenate %28, %29 in 1 : vector<16x28xf32>, vector<16x4xf32> -> vector<16x32xf32>
    %31 = vector.extract_strided_slice %25 {offsets = [0, 28], sizes = [16, 4], strides = [1, 1]} : vector<16x32xf32> to vector<16x4xf32>
    %32 = vector.extract_strided_slice %25 {offsets = [0, 0], sizes = [16, 28], strides = [1, 1]} : vector<16x32xf32> to vector<16x28xf32>
    %33 = tpu.concatenate %31, %32 in 1 : vector<16x4xf32>, vector<16x28xf32> -> vector<16x32xf32>
    %34 = arith.mulf %25, %5 : vector<16x32xf32>
    %35 = arith.mulf %30, %7 : vector<16x32xf32>
    %36 = arith.addf %34, %35 : vector<16x32xf32>
    %37 = arith.mulf %33, %9 : vector<16x32xf32>
    %38 = arith.addf %36, %37 : vector<16x32xf32>
    %cst_15 = arith.constant 0.353553385 : f32
    %39 = vector.broadcast %cst_15 : f32 to vector<16x32xf32>
    %40 = arith.mulf %38, %39 : vector<16x32xf32>
    %41 = vector.extract_strided_slice %26 {offsets = [0, 4], sizes = [16, 12], strides = [1, 1]} : vector<16x16xf32> to vector<16x12xf32>
    %42 = vector.extract_strided_slice %26 {offsets = [0, 0], sizes = [16, 4], strides = [1, 1]} : vector<16x16xf32> to vector<16x4xf32>
    %43 = tpu.concatenate %41, %42 in 1 : vector<16x12xf32>, vector<16x4xf32> -> vector<16x16xf32>
    %44 = vector.extract_strided_slice %26 {offsets = [0, 12], sizes = [16, 4], strides = [1, 1]} : vector<16x16xf32> to vector<16x4xf32>
    %45 = vector.extract_strided_slice %26 {offsets = [0, 0], sizes = [16, 12], strides = [1, 1]} : vector<16x16xf32> to vector<16x12xf32>
    %46 = tpu.concatenate %44, %45 in 1 : vector<16x4xf32>, vector<16x12xf32> -> vector<16x16xf32>
    %47 = vector.extract_strided_slice %5 {offsets = [0, 0], sizes = [16, 16], strides = [1, 1]} : vector<16x32xf32> to vector<16x16xf32>
    %48 = arith.mulf %26, %47 : vector<16x16xf32>
    %49 = vector.extract_strided_slice %7 {offsets = [0, 0], sizes = [16, 16], strides = [1, 1]} : vector<16x32xf32> to vector<16x16xf32>
    %50 = arith.mulf %43, %49 : vector<16x16xf32>
    %51 = arith.addf %48, %50 : vector<16x16xf32>
    %52 = vector.extract_strided_slice %9 {offsets = [0, 0], sizes = [16, 16], strides = [1, 1]} : vector<16x32xf32> to vector<16x16xf32>
    %53 = arith.mulf %46, %52 : vector<16x16xf32>
    %54 = arith.addf %51, %53 : vector<16x16xf32>
    %55 = vector.shape_cast %40 : vector<16x32xf32> to vector<2x8x32xf32>
    %56 = vector.shape_cast %54 : vector<16x16xf32> to vector<2x8x16xf32>
    %57 = vector.shape_cast %27 : vector<16x16xf32> to vector<2x8x16xf32>
    %58 = vector.extract_strided_slice %55 {offsets = [0, 0, 0], sizes = [2, 8, 8], strides = [1, 1, 1]} : vector<2x8x32xf32> to vector<2x8x8xf32>
    %59 = arith.truncf %58 : vector<2x8x8xf32> to vector<2x8x8xbf16>
    %60 = vector.extract_strided_slice %56 {offsets = [0, 0, 0], sizes = [2, 8, 8], strides = [1, 1, 1]} : vector<2x8x16xf32> to vector<2x8x8xf32>
    %61 = arith.truncf %60 : vector<2x8x8xf32> to vector<2x8x8xbf16>
    %62 = vector.extract_strided_slice %57 {offsets = [0, 0, 0], sizes = [2, 8, 8], strides = [1, 1, 1]} : vector<2x8x16xf32> to vector<2x8x8xf32>
    %63 = arith.truncf %62 : vector<2x8x8xf32> to vector<2x8x8xbf16>
    "tpu.trace_start"() <{level = 10 : i32, message = "bqd,bkd->bqk"}> : () -> ()
    %cst_16 = arith.constant dense<0.000000e+00> : vector<2x8x8xf32>
    %64 = tpu.matmul %59, %61, %cst_16 {dimension_numbers = #tpu.dot_dimension_numbers<[2], [2], [1], [1], [0, 0, 0, 1, 1, 1], [0], [0]>} : vector<2x8x8xbf16>, vector<2x8x8xbf16>, vector<2x8x8xf32> -> vector<2x8x8xf32>
    "tpu.trace_stop"() : () -> ()
    %cst_17 = arith.constant dense<0xFF800000> : vector<2x8xf32>
    %65 = vector.multi_reduction <maximumf>, %64, %cst_17 [2] : vector<2x8x8xf32> to vector<2x8xf32>
    %66 = vector.shape_cast %65 : vector<2x8xf32> to vector<2x8x1xf32>
    %67 = vector.broadcast %66 : vector<2x8x1xf32> to vector<2x8x8xf32>
    %68 = arith.subf %64, %67 : vector<2x8x8xf32>
    %69 = math.exp %68 : vector<2x8x8xf32>
    %cst_18 = arith.constant dense<0.000000e+00> : vector<2x8xf32>
    %70 = vector.multi_reduction <add>, %69, %cst_18 [2] : vector<2x8x8xf32> to vector<2x8xf32>
    %71 = vector.shape_cast %70 : vector<2x8xf32> to vector<2x8x1xf32>
    %72 = vector.broadcast %71 : vector<2x8x1xf32> to vector<2x8x8xf32>
    %73 = arith.divf %69, %72 : vector<2x8x8xf32>
    %74 = arith.truncf %73 : vector<2x8x8xf32> to vector<2x8x8xbf16>
    "tpu.trace_start"() <{level = 10 : i32, message = "bqk,bkd->bqd"}> : () -> ()
    %cst_19 = arith.constant dense<0.000000e+00> : vector<2x8x8xf32>
    %75 = tpu.matmul %74, %63, %cst_19 {dimension_numbers = #tpu.dot_dimension_numbers<[2], [1], [1], [2], [0, 0, 0, 1, 1, 2], [0], [0]>} : vector<2x8x8xbf16>, vector<2x8x8xbf16>, vector<2x8x8xf32> -> vector<2x8x8xf32>
    "tpu.trace_stop"() : () -> ()
    %76 = vector.extract_strided_slice %55 {offsets = [0, 0, 8], sizes = [2, 8, 8], strides = [1, 1, 1]} : vector<2x8x32xf32> to vector<2x8x8xf32>
    %77 = arith.truncf %76 : vector<2x8x8xf32> to vector<2x8x8xbf16>
    %78 = vector.extract_strided_slice %56 {offsets = [0, 0, 0], sizes = [2, 8, 8], strides = [1, 1, 1]} : vector<2x8x16xf32> to vector<2x8x8xf32>
    %79 = arith.truncf %78 : vector<2x8x8xf32> to vector<2x8x8xbf16>
    %80 = vector.extract_strided_slice %57 {offsets = [0, 0, 0], sizes = [2, 8, 8], strides = [1, 1, 1]} : vector<2x8x16xf32> to vector<2x8x8xf32>
    %81 = arith.truncf %80 : vector<2x8x8xf32> to vector<2x8x8xbf16>
    "tpu.trace_start"() <{level = 10 : i32, message = "bqd,bkd->bqk"}> : () -> ()
    %cst_20 = arith.constant dense<0.000000e+00> : vector<2x8x8xf32>
    %82 = tpu.matmul %77, %79, %cst_20 {dimension_numbers = #tpu.dot_dimension_numbers<[2], [2], [1], [1], [0, 0, 0, 1, 1, 1], [0], [0]>} : vector<2x8x8xbf16>, vector<2x8x8xbf16>, vector<2x8x8xf32> -> vector<2x8x8xf32>
    "tpu.trace_stop"() : () -> ()
    %cst_21 = arith.constant dense<0xFF800000> : vector<2x8xf32>
    %83 = vector.multi_reduction <maximumf>, %82, %cst_21 [2] : vector<2x8x8xf32> to vector<2x8xf32>
    %84 = vector.shape_cast %83 : vector<2x8xf32> to vector<2x8x1xf32>
    %85 = vector.broadcast %84 : vector<2x8x1xf32> to vector<2x8x8xf32>
    %86 = arith.subf %82, %85 : vector<2x8x8xf32>
    %87 = math.exp %86 : vector<2x8x8xf32>
    %cst_22 = arith.constant dense<0.000000e+00> : vector<2x8xf32>
    %88 = vector.multi_reduction <add>, %87, %cst_22 [2] : vector<2x8x8xf32> to vector<2x8xf32>
    %89 = vector.shape_cast %88 : vector<2x8xf32> to vector<2x8x1xf32>
    %90 = vector.broadcast %89 : vector<2x8x1xf32> to vector<2x8x8xf32>
    %91 = arith.divf %87, %90 : vector<2x8x8xf32>
    %92 = arith.truncf %91 : vector<2x8x8xf32> to vector<2x8x8xbf16>
    "tpu.trace_start"() <{level = 10 : i32, message = "bqk,bkd->bqd"}> : () -> ()
    %cst_23 = arith.constant dense<0.000000e+00> : vector<2x8x8xf32>
    %93 = tpu.matmul %92, %81, %cst_23 {dimension_numbers = #tpu.dot_dimension_numbers<[2], [1], [1], [2], [0, 0, 0, 1, 1, 2], [0], [0]>} : vector<2x8x8xbf16>, vector<2x8x8xbf16>, vector<2x8x8xf32> -> vector<2x8x8xf32>
    "tpu.trace_stop"() : () -> ()
    %94 = vector.extract_strided_slice %55 {offsets = [0, 0, 16], sizes = [2, 8, 8], strides = [1, 1, 1]} : vector<2x8x32xf32> to vector<2x8x8xf32>
    %95 = arith.truncf %94 : vector<2x8x8xf32> to vector<2x8x8xbf16>
    %96 = vector.extract_strided_slice %56 {offsets = [0, 0, 8], sizes = [2, 8, 8], strides = [1, 1, 1]} : vector<2x8x16xf32> to vector<2x8x8xf32>
    %97 = arith.truncf %96 : vector<2x8x8xf32> to vector<2x8x8xbf16>
    %98 = vector.extract_strided_slice %57 {offsets = [0, 0, 8], sizes = [2, 8, 8], strides = [1, 1, 1]} : vector<2x8x16xf32> to vector<2x8x8xf32>
    %99 = arith.truncf %98 : vector<2x8x8xf32> to vector<2x8x8xbf16>
    "tpu.trace_start"() <{level = 10 : i32, message = "bqd,bkd->bqk"}> : () -> ()
    %cst_24 = arith.constant dense<0.000000e+00> : vector<2x8x8xf32>
    %100 = tpu.matmul %95, %97, %cst_24 {dimension_numbers = #tpu.dot_dimension_numbers<[2], [2], [1], [1], [0, 0, 0, 1, 1, 1], [0], [0]>} : vector<2x8x8xbf16>, vector<2x8x8xbf16>, vector<2x8x8xf32> -> vector<2x8x8xf32>
    "tpu.trace_stop"() : () -> ()
    %cst_25 = arith.constant dense<0xFF800000> : vector<2x8xf32>
    %101 = vector.multi_reduction <maximumf>, %100, %cst_25 [2] : vector<2x8x8xf32> to vector<2x8xf32>
    %102 = vector.shape_cast %101 : vector<2x8xf32> to vector<2x8x1xf32>
    %103 = vector.broadcast %102 : vector<2x8x1xf32> to vector<2x8x8xf32>
    %104 = arith.subf %100, %103 : vector<2x8x8xf32>
    %105 = math.exp %104 : vector<2x8x8xf32>
    %cst_26 = arith.constant dense<0.000000e+00> : vector<2x8xf32>
    %106 = vector.multi_reduction <add>, %105, %cst_26 [2] : vector<2x8x8xf32> to vector<2x8xf32>
    %107 = vector.shape_cast %106 : vector<2x8xf32> to vector<2x8x1xf32>
    %108 = vector.broadcast %107 : vector<2x8x1xf32> to vector<2x8x8xf32>
    %109 = arith.divf %105, %108 : vector<2x8x8xf32>
    %110 = arith.truncf %109 : vector<2x8x8xf32> to vector<2x8x8xbf16>
    "tpu.trace_start"() <{level = 10 : i32, message = "bqk,bkd->bqd"}> : () -> ()
    %cst_27 = arith.constant dense<0.000000e+00> : vector<2x8x8xf32>
    %111 = tpu.matmul %110, %99, %cst_27 {dimension_numbers = #tpu.dot_dimension_numbers<[2], [1], [1], [2], [0, 0, 0, 1, 1, 2], [0], [0]>} : vector<2x8x8xbf16>, vector<2x8x8xbf16>, vector<2x8x8xf32> -> vector<2x8x8xf32>
    "tpu.trace_stop"() : () -> ()
    %112 = vector.extract_strided_slice %55 {offsets = [0, 0, 24], sizes = [2, 8, 8], strides = [1, 1, 1]} : vector<2x8x32xf32> to vector<2x8x8xf32>
    %113 = arith.truncf %112 : vector<2x8x8xf32> to vector<2x8x8xbf16>
    %114 = vector.extract_strided_slice %56 {offsets = [0, 0, 8], sizes = [2, 8, 8], strides = [1, 1, 1]} : vector<2x8x16xf32> to vector<2x8x8xf32>
    %115 = arith.truncf %114 : vector<2x8x8xf32> to vector<2x8x8xbf16>
    %116 = vector.extract_strided_slice %57 {offsets = [0, 0, 8], sizes = [2, 8, 8], strides = [1, 1, 1]} : vector<2x8x16xf32> to vector<2x8x8xf32>
    %117 = arith.truncf %116 : vector<2x8x8xf32> to vector<2x8x8xbf16>
    "tpu.trace_start"() <{level = 10 : i32, message = "bqd,bkd->bqk"}> : () -> ()
    %cst_28 = arith.constant dense<0.000000e+00> : vector<2x8x8xf32>
    %118 = tpu.matmul %113, %115, %cst_28 {dimension_numbers = #tpu.dot_dimension_numbers<[2], [2], [1], [1], [0, 0, 0, 1, 1, 1], [0], [0]>} : vector<2x8x8xbf16>, vector<2x8x8xbf16>, vector<2x8x8xf32> -> vector<2x8x8xf32>
    "tpu.trace_stop"() : () -> ()
    %cst_29 = arith.constant dense<0xFF800000> : vector<2x8xf32>
    %119 = vector.multi_reduction <maximumf>, %118, %cst_29 [2] : vector<2x8x8xf32> to vector<2x8xf32>
    %120 = vector.shape_cast %119 : vector<2x8xf32> to vector<2x8x1xf32>
    %121 = vector.broadcast %120 : vector<2x8x1xf32> to vector<2x8x8xf32>
    %122 = arith.subf %118, %121 : vector<2x8x8xf32>
    %123 = math.exp %122 : vector<2x8x8xf32>
    %cst_30 = arith.constant dense<0.000000e+00> : vector<2x8xf32>
    %124 = vector.multi_reduction <add>, %123, %cst_30 [2] : vector<2x8x8xf32> to vector<2x8xf32>
    %125 = vector.shape_cast %124 : vector<2x8xf32> to vector<2x8x1xf32>
    %126 = vector.broadcast %125 : vector<2x8x1xf32> to vector<2x8x8xf32>
    %127 = arith.divf %123, %126 : vector<2x8x8xf32>
    %128 = arith.truncf %127 : vector<2x8x8xf32> to vector<2x8x8xbf16>
    "tpu.trace_start"() <{level = 10 : i32, message = "bqk,bkd->bqd"}> : () -> ()
    %cst_31 = arith.constant dense<0.000000e+00> : vector<2x8x8xf32>
    %129 = tpu.matmul %128, %117, %cst_31 {dimension_numbers = #tpu.dot_dimension_numbers<[2], [1], [1], [2], [0, 0, 0, 1, 1, 2], [0], [0]>} : vector<2x8x8xbf16>, vector<2x8x8xbf16>, vector<2x8x8xf32> -> vector<2x8x8xf32>
    "tpu.trace_stop"() : () -> ()
    %130 = tpu.concatenate %75, %93, %111, %129 in 2 : vector<2x8x8xf32>, vector<2x8x8xf32>, vector<2x8x8xf32>, vector<2x8x8xf32> -> vector<2x8x32xf32>
    %131 = vector.shape_cast %130 : vector<2x8x32xf32> to vector<16x32xf32>
    %132 = arith.truncf %131 : vector<16x32xf32> to vector<16x32xbf16>
    %c0_32 = arith.constant 0 : index
    %c0_33 = arith.constant 0 : index
    %133 = vector.load %arg3[%c0_32, %c0_33] : memref<32x32xbf16, #tpu.memory_space<vmem>>, vector<32x32xbf16>
    %cst_34 = arith.constant dense<0.000000e+00> : vector<16x32xf32>
    %134 = tpu.matmul %132, %133, %cst_34 {dimension_numbers = #tpu.dot_dimension_numbers<[1], [0], [0], [1], [0, 0, 1, 1], [], []>} : vector<16x32xbf16>, vector<32x32xbf16>, vector<16x32xf32> -> vector<16x32xf32>
    %135 = arith.addf %0, %134 : vector<16x32xf32>
    %136 = arith.mulf %135, %135 : vector<16x32xf32>
    %cst_35 = arith.constant dense<0.000000e+00> : vector<16xf32>
    %137 = vector.multi_reduction <add>, %136, %cst_35 [1] : vector<16x32xf32> to vector<16xf32>
    %138 = vector.shape_cast %137 : vector<16xf32> to vector<16x1xf32>
    %cst_36 = arith.constant 3.200000e+01 : f32
    %139 = vector.broadcast %cst_36 : f32 to vector<16x1xf32>
    %140 = arith.divf %138, %139 : vector<16x1xf32>
    %cst_37 = arith.constant 9.99999974E-6 : f32
    %141 = vector.broadcast %cst_37 : f32 to vector<16x1xf32>
    %142 = arith.addf %140, %141 : vector<16x1xf32>
    %143 = math.rsqrt %142 : vector<16x1xf32>
    %144 = vector.broadcast %143 : vector<16x1xf32> to vector<16x32xf32>
    %145 = arith.mulf %135, %144 : vector<16x32xf32>
    %146 = vector.broadcast %3 : vector<1x32xf32> to vector<16x32xf32>
    %147 = arith.mulf %145, %146 : vector<16x32xf32>
    %148 = arith.truncf %147 : vector<16x32xf32> to vector<16x32xbf16>
    %c0_38 = arith.constant 0 : index
    %c0_39 = arith.constant 0 : index
    %149 = vector.load %arg4[%c0_38, %c0_39] : memref<32x128xbf16, #tpu.memory_space<vmem>>, vector<32x128xbf16>
    %cst_40 = arith.constant dense<0.000000e+00> : vector<16x128xf32>
    %150 = tpu.matmul %148, %149, %cst_40 {dimension_numbers = #tpu.dot_dimension_numbers<[1], [0], [0], [1], [0, 0, 1, 1], [], []>} : vector<16x32xbf16>, vector<32x128xbf16>, vector<16x128xf32> -> vector<16x128xf32>
    %151 = vector.extract_strided_slice %150 {offsets = [0, 0], sizes = [16, 64], strides = [1, 1]} : vector<16x128xf32> to vector<16x64xf32>
    %152 = vector.extract_strided_slice %150 {offsets = [0, 64], sizes = [16, 64], strides = [1, 1]} : vector<16x128xf32> to vector<16x64xf32>
    %153 = arith.negf %151 : vector<16x64xf32>
    %154 = math.exp %153 : vector<16x64xf32>
    %cst_41 = arith.constant 1.000000e+00 : f32
    %155 = vector.broadcast %cst_41 : f32 to vector<16x64xf32>
    %156 = arith.addf %155, %154 : vector<16x64xf32>
    %157 = arith.divf %155, %156 : vector<16x64xf32>
    %158 = arith.mulf %151, %157 : vector<16x64xf32>
    %159 = arith.mulf %158, %152 : vector<16x64xf32>
    %160 = arith.truncf %159 : vector<16x64xf32> to vector<16x64xbf16>
    %c0_42 = arith.constant 0 : index
    %c0_43 = arith.constant 0 : index
    %161 = vector.load %arg5[%c0_42, %c0_43] : memref<64x32xbf16, #tpu.memory_space<vmem>>, vector<64x32xbf16>
    %cst_44 = arith.constant dense<0.000000e+00> : vector<16x32xf32>
    %162 = tpu.matmul %160, %161, %cst_44 {dimension_numbers = #tpu.dot_dimension_numbers<[1], [0], [0], [1], [0, 0, 1, 1], [], []>} : vector<16x64xbf16>, vector<64x32xbf16>, vector<16x32xf32> -> vector<16x32xf32>
    %163 = arith.addf %135, %162 : vector<16x32xf32>
    %c0_45 = arith.constant 0 : index
    %c0_46 = arith.constant 0 : index
    %164 = vector.load %arg7[%c0_45, %c0_46] : memref<16x32xf32, #tpu.memory_space<vmem>>, vector<16x32xf32>
    tpu.vector_store %arg7[%c0_45, %c0_46], %163 {strides = array<i32>} : memref<16x32xf32, #tpu.memory_space<vmem>>, vector<16x32xf32>,
    return
  }
}

</mosaic_0001>

<llo_original>
// kernel: llama_decoder_layer.1
$region0: #{llama_decoder_layer.1}
  #allocation0 [shape = 'u32[]', space=smem, size = 0x4, offset = 0x4, fixed_abs, tag = 'smem constant byte address 0x4 - core index']
  #allocation1 [shape = 'u32[144,128]{1,0:T(1,128)}', space=vmem, size = 0x12000, scoped, tag = 'internal scratch']
  %s0 = inlined_call_operand.vmem [shape: f32[16,32], index: 0, kind: input, shape index: {}]
  %s1 = inlined_call_operand.vmem [shape: f32[3,16,32], index: 1, kind: input, shape index: {}]
  %s2 = inlined_call_operand.vmem [shape: bf16[32,64], index: 2, kind: input, shape index: {}]
  %s3 = inlined_call_operand.vmem [shape: bf16[32,32], index: 3, kind: input, shape index: {}]
  %s4 = inlined_call_operand.vmem [shape: bf16[32,128], index: 4, kind: input, shape index: {}]
  %s5 = inlined_call_operand.vmem [shape: bf16[64,32], index: 5, kind: input, shape index: {}]
  %s6 = inlined_call_operand.vmem [shape: f32[2,32], index: 6, kind: input, shape index: {}]
  %s7 = inlined_call_operand.hbm [shape: f32[16,32], index: 7, kind: output, shape index: {}]
  %s8 = sld [smem:[#allocation0]]
  $region38: #{llama_decoder_layer.1} parent=0
    _
  %s10 = ssub.s32 1, %s8
  %s11 = scalar_select 0, %s10, %s8
  $region1: #{llama_decoder_layer.1} parent=0
    #allocation2 [shape = 'u8[8192]{0}', space=vmem, size = 0x2000, scoped, tag = 'output window, operand 0, single buffered']
    #allocation3 [shape = 's32[1]{0}', space=sflag, size = 0x4, scoped, tag = 'scoped memory for llama_decoder_layer.1']
    %12 = vsyncpa [#allocation3], 0
    // Predicated region
    $region2: #{llama_decoder_layer.1} parent=1 // pred_check
      _
    $region3: #{llama_decoder_layer.1} parent=1 // pred_check_branch
      %14 = sbr.rel (0) target = $region5
    $region4: #{llama_decoder_layer.1} parent=1 // pred_region
      _
    $region5: #{llama_decoder_layer.1} parent=1 // pred_fallthru
      _
    // Predicated region
    $region6: #{llama_decoder_layer.1} parent=1 // pred_check
      _
    $region7: #{llama_decoder_layer.1} parent=1 // pred_check_branch
      %16 = sbr.rel (0) target = $region9
    $region8: #{llama_decoder_layer.1} parent=1 // pred_region
      _
    $region9: #{llama_decoder_layer.1} parent=1 // pred_fallthru
      _
    // Predicated region
    $region10: #{llama_decoder_layer.1} parent=1 // pred_check
      _
    $region11: #{llama_decoder_layer.1} parent=1 // pred_check_branch
      %18 = sbr.rel (0) target = $region13
    $region12: #{llama_decoder_layer.1} parent=1 // pred_region
      _
    $region13: #{llama_decoder_layer.1} parent=1 // pred_fallthru
      _
    // Predicated region
    $region14: #{llama_decoder_layer.1} parent=1 // pred_check
      _
    $region15: #{llama_decoder_layer.1} parent=1 // pred_check_branch
      %20 = sbr.rel (0) target = $region17
    $region16: #{llama_decoder_layer.1} parent=1 // pred_region
      _
    $region17: #{llama_decoder_layer.1} parent=1 // pred_fallthru
      _
    // Predicated region
    $region18: #{llama_decoder_layer.1} parent=1 // pred_check
      _
    $region19: #{llama_decoder_layer.1} parent=1 // pred_check_branch
      %22 = sbr.rel (0) target = $region21
    $region20: #{llama_decoder_layer.1} parent=1 // pred_region
      _
    $region21: #{llama_decoder_layer.1} parent=1 // pred_fallthru
      _
    // Predicated region
    $region22: #{llama_decoder_layer.1} parent=1 // pred_check
      _
    $region23: #{llama_decoder_layer.1} parent=1 // pred_check_branch
      %24 = sbr.rel (0) target = $region25
    $region24: #{llama_decoder_layer.1} parent=1 // pred_region
      _
    $region25: #{llama_decoder_layer.1} parent=1 // pred_fallthru
      _
    // Predicated region
    $region26: #{llama_decoder_layer.1} parent=1 // pred_check
      _
    $region27: #{llama_decoder_layer.1} parent=1 // pred_check_branch
      %26 = sbr.rel (0) target = $region29
    $region28: #{llama_decoder_layer.1} parent=1 // pred_region
      _
    $region29: #{llama_decoder_layer.1} parent=1 // pred_fallthru
      _
    %v28 = vld [vmem:[%s0] sm:$0xff]
    %v29 = vld [vmem:[%s0 + $0x8] sm:$0xff]
    %v30 = vld [vmem:[%s6] sm:$0x3]
    %v31 = vld [vmem:[%s1] sm:$0xff]
    %v32 = vld [vmem:[%s1 + $0x8] sm:$0xff]
    %s33 = scalar_lea.vmem %s1, 16
    %v34 = vld [vmem:[%s33] sm:$0xff]
    %v35 = vld [vmem:[%s33 + $0x8] sm:$0xff]
    %s36 = scalar_lea.vmem %s1, 32
    %v37 = vld [vmem:[%s36] sm:$0xff]
    %v38 = vld [vmem:[%s36 + $0x8] sm:$0xff]
    %v39 = vmul.f32 %v28, %v28
    %v40 = vmul.f32 %v29, %v29
    %vm41 = vcmask 261120
    %v42 = vsel %vm41, %v39, 0.0
    %43 = vadd.xlane.f32.xlu0 %v42
    %v44 = vpop.xlane.xlu0 %43
    %v45 = vsel %vm41, %v40, 0.0
    %46 = vadd.xlane.f32.xlu0 %v45
    %v47 = vpop.xlane.xlu0 %46
    %v48 = vrcp.pop 32.0
    %v49 = vmul.f32 %v44, %v48
    %v50 = vmul.f32 %v47, %v48
    %v51 = vadd.f32 %v49, 1e-05
    %v52 = vadd.f32 %v50, 1e-05
    %v53 = vrsqrt.pop %v51
    %v54 = vrsqrt.pop %v52
    %v55 = vmul.f32 %v28, %v53
    %v56 = vmul.f32 %v29, %v54
    %v57 = vlaneseq
    %v58 = vshrl.u32 %v57, 7
    %v59 = vsub.s32 0, %v58
    %v60 = vrot.slane %v30, %v59
    %v61 = vmul.f32 %v55, %v60
    %v62 = vmul.f32 %v56, %v60
    %v63 = vpack.c.bf16 %v62, %v61
    %v64 = vld [vmem:[%s2] sm:$0xf]
    %v65 = vld [vmem:[%s2 + $0x4] sm:$0xf]
    %v66 = vld [vmem:[%s2 + $0x8] sm:$0xf]
    %v67 = vld [vmem:[%s2 + $0xc] sm:$0xf]
    %v72 = vunpack.c.l.b16 %v64
    %v73 = vunpack.c.l.b16 %v65
    %v74 = vunpack.c.l.b16 %v66
    %v75 = vunpack.c.l.b16 %v67
    %v76 = vpack.c.b16 %v73, %v72
    %v77 = vpack.c.b16 %v75, %v74
    %v81 = vsel %vm41, %v63, 0
    %83 = vmatprep.subr.bf16.mxu0 0
    %84 = vmatpush1.bf16.msra.mxu0 0
    %85 = vmatprep.subr.bf16.mxu0 0
    %86 = vmatpush1.bf16.msra.mxu0 0
    %87 = vmatprep.subr.bf16.mxu0 0
    %88 = vmatpush1.bf16.msra.mxu0 0
    %89 = vmatprep.subr.bf16.mxu0 0
    %90 = vmatpush1.bf16.msra.mxu0 0
    %91 = vmatprep.subr.bf16.mxu0 0
    %92 = vmatpush1.bf16.msra.mxu0 0
    %93 = vmatprep.subr.bf16.mxu0 0
    %94 = vmatpush1.bf16.msra.mxu0 0
    %95 = vmatprep.subr.bf16.mxu0 0
    %96 = vmatpush1.bf16.msra.mxu0 %v77
    %97 = vmatprep.subr.bf16.mxu0 0
    %98 = vmatpush1.bf16.msra.mxu0 %v76
    %99 = vmatprep.subr.bf16.mxu0 0
    %100 = vmatpush2.bf16.msra.mxu0 0
    %101 = vmatprep.subr.bf16.mxu0 0
    %102 = vmatpush2.bf16.msra.mxu0 0
    %103 = vmatprep.subr.bf16.mxu0 0
    %104 = vmatpush2.bf16.msra.mxu0 0
    %105 = vmatprep.subr.bf16.mxu0 0
    %106 = vmatpush2.bf16.msra.mxu0 0
    %107 = vmatprep.subr.bf16.mxu0 0
    %108 = vmatpush2.bf16.msra.mxu0 0
    %109 = vmatprep.subr.bf16.mxu0 0
    %110 = vmatpush2.bf16.msra.mxu0 0
    %111 = vmatprep.subr.bf16.mxu0 0
    %112 = vmatpush2.bf16.msra.mxu0 0
    %113 = vmatprep.subr.bf16.mxu0 0
    %114 = vmatpush2.bf16.msra.mxu0 0
    %115 = vmatprep.mubr.bf16.mxu0 0
    %116 = vmatmul.mubr.bf16.gmra.mxu0 %v81
    %v117 = vpop.f32.mrf.mxu0
    %v118 = vadd.f32 0.0, %v117
    %v119 = vpop.f32.mrf.mxu0
    %v120 = vpop.f32.mrf.mxu0
    %v121 = vadd.f32 0.0, %v120
    %v122 = vpop.f32.mrf.mxu0
    %123 = vdwg.mxu0
    %126 = vrot.lane.b32.xlu0 %v118, 124
    %v127 = vpop.permute.xlu0 %126
    %128 = vrot.lane.b32.xlu0 %v121, 124
    %v129 = vpop.permute.xlu0 %128
    %132 = vrot.lane.b32.xlu0 %v118, 28
    %v133 = vpop.permute.xlu0 %132
    %134 = vrot.lane.b32.xlu0 %v121, 28
    %v135 = vpop.permute.xlu0 %134
    %vm138 = vcmask 228352
    %v139 = vsel %vm138, %v127, %v133
    %v140 = vsel %vm138, %v129, %v135
    %141 = vrot.lane.b32.xlu0 %v118, 100
    %v142 = vpop.permute.xlu0 %141
    %143 = vrot.lane.b32.xlu0 %v121, 100
    %v144 = vpop.permute.xlu0 %143
    %147 = vrot.lane.b32.xlu0 %v118, 4
    %v148 = vpop.permute.xlu0 %147
    %149 = vrot.lane.b32.xlu0 %v121, 4
    %v150 = vpop.permute.xlu0 %149
    %vm153 = vcmask 31744
    %v154 = vsel %vm153, %v142, %v148
    %v155 = vsel %vm153, %v144, %v150
    %v156 = vmul.f32 %v118, %v31
    %v157 = vmul.f32 %v121, %v32
    %v158 = vmul.f32 %v139, %v34
    %v159 = vmul.f32 %v140, %v35
    %v160 = vadd.f32 %v156, %v158
    %v161 = vadd.f32 %v157, %v159
    %v162 = vmul.f32 %v154, %v37
    %v163 = vmul.f32 %v155, %v38
    %v164 = vadd.f32 %v160, %v162
    %v165 = vadd.f32 %v161, %v163
    %v166 = vmul.f32 %v164, 0.35355338
    %v167 = vmul.f32 %v165, 0.35355338
    %168 = vrot.lane.b32.xlu0 %v118, 92
    %v169 = vpop.permute.xlu0 %168
    %170 = vrot.lane.b32.xlu0 %v121, 92
    %v171 = vpop.permute.xlu0 %170
    %174 = vrot.lane.b32.xlu0 %v118, 108
    %v175 = vpop.permute.xlu0 %174
    %176 = vrot.lane.b32.xlu0 %v121, 108
    %v177 = vpop.permute.xlu0 %176
    %vm180 = vcmask 97280
    %v181 = vsel %vm180, %v169, %v175
    %v182 = vsel %vm180, %v171, %v177
    %183 = vrot.lane.b32.xlu0 %v118, 84
    %v184 = vpop.permute.xlu0 %183
    %185 = vrot.lane.b32.xlu0 %v121, 84
    %v186 = vpop.permute.xlu0 %185
    %v189 = vsel %vm153, %v184, %v142
    %v190 = vsel %vm153, %v186, %v144
    %193 = vrot.lane.b32.xlu0 %v31, 32
    %v194 = vpop.permute.xlu0 %193
    %195 = vrot.lane.b32.xlu0 %v32, 32
    %v196 = vpop.permute.xlu0 %195
    %v199 = vmul.f32 %v118, %v194
    %v200 = vmul.f32 %v121, %v196
    %v201 = vmul.f32 %v181, %v34
    %v202 = vmul.f32 %v182, %v35
    %205 = vrot.lane.b32.xlu0 %v201, 32
    %v206 = vpop.permute.xlu0 %205
    %207 = vrot.lane.b32.xlu0 %v202, 32
    %v208 = vpop.permute.xlu0 %207
    %v211 = vadd.f32 %v199, %v206
    %v212 = vadd.f32 %v200, %v208
    %v213 = vmul.f32 %v189, %v37
    %v214 = vmul.f32 %v190, %v38
    %217 = vrot.lane.b32.xlu0 %v213, 32
    %v218 = vpop.permute.xlu0 %217
    %219 = vrot.lane.b32.xlu0 %v214, 32
    %v220 = vpop.permute.xlu0 %219
    %v223 = vadd.f32 %v211, %v218
    %v224 = vadd.f32 %v212, %v220
    %v225 = vpack.c.bf16 %v166, %v166
    %v226 = vpack.c.bf16 %v167, %v167
    %v227 = vpack.c.bf16 %v223, %v223
    %v228 = vpack.c.bf16 %v224, %v224
    %v229 = vpack.c.bf16 %v118, %v118
    %v230 = vpack.c.bf16 %v121, %v121
    %232 = vrot.lane.b32.xlu0 %v227, 96
    %v233 = vpop.permute.xlu0 %232
    %vm234 = vcmask 64512
    %v236 = vsel %vm234, %v225, 0
    %v239 = vsel %vm234, %v233, 0
    %241 = vmatprep.subr.bf16.mxu0 0
    %242 = vmatpush1.bf16.xpose.msra.mxu0 0
    %243 = vmatprep.subr.bf16.mxu0 0
    %244 = vmatpush1.bf16.xpose.msra.mxu0 0
    %245 = vmatprep.subr.bf16.mxu0 0
    %246 = vmatpush1.bf16.xpose.msra.mxu0 0
    %247 = vmatprep.subr.bf16.mxu0 0
    %248 = vmatpush1.bf16.xpose.msra.mxu0 0
    %249 = vmatprep.subr.bf16.mxu0 0
    %250 = vmatpush1.bf16.xpose.msra.mxu0 0
    %251 = vmatprep.subr.bf16.mxu0 0
    %252 = vmatpush1.bf16.xpose.msra.mxu0 0
    %253 = vmatprep.subr.bf16.mxu0 0
    %254 = vmatpush1.bf16.xpose.msra.mxu0 0
    %255 = vmatprep.subr.bf16.mxu0 0
    %256 = vmatpush1.bf16.xpose.msra.mxu0 %v239
    %257 = vmatprep.subr.bf16.mxu0 0
    %258 = vmatpush2.bf16.xpose.msra.mxu0 0
    %259 = vmatprep.subr.bf16.mxu0 0
    %260 = vmatpush2.bf16.xpose.msra.mxu0 0
    %261 = vmatprep.subr.bf16.mxu0 0
    %262 = vmatpush2.bf16.xpose.msra.mxu0 0
    %263 = vmatprep.subr.bf16.mxu0 0
    %264 = vmatpush2.bf16.xpose.msra.mxu0 0
    %265 = vmatprep.subr.bf16.mxu0 0
    %266 = vmatpush2.bf16.xpose.msra.mxu0 0
    %267 = vmatprep.subr.bf16.mxu0 0
    %268 = vmatpush2.bf16.xpose.msra.mxu0 0
    %269 = vmatprep.subr.bf16.mxu0 0
    %270 = vmatpush2.bf16.xpose.msra.mxu0 0
    %271 = vmatprep.subr.bf16.mxu0 0
    %272 = vmatpush2.bf16.xpose.msra.mxu0 0
    %273 = vmatprep.mubr.bf16.mxu0 0
    %274 = vmatmul.mubr.bf16.gmra.mxu0 %v236
    %v275 = vpop.f32.mrf.mxu0
    %v276 = vadd.f32 0.0, %v275
    %v277 = vpop.f32.mrf.mxu0
    %v278 = vpop.f32.mrf.mxu0
    %v279 = vpop.f32.mrf.mxu0
    %280 = vdwg.mxu0
    %282 = vrot.lane.b32.xlu0 %v228, 96
    %v283 = vpop.permute.xlu0 %282
    %v285 = vsel %vm234, %v226, 0
    %v288 = vsel %vm234, %v283, 0
    %290 = vmatprep.subr.bf16.mxu0 0
    %291 = vmatpush1.bf16.xpose.msra.mxu0 0
    %292 = vmatprep.subr.bf16.mxu0 0
    %293 = vmatpush1.bf16.xpose.msra.mxu0 0
    %294 = vmatprep.subr.bf16.mxu0 0
    %295 = vmatpush1.bf16.xpose.msra.mxu0 0
    %296 = vmatprep.subr.bf16.mxu0 0
    %297 = vmatpush1.bf16.xpose.msra.mxu0 0
    %298 = vmatprep.subr.bf16.mxu0 0
    %299 = vmatpush1.bf16.xpose.msra.mxu0 0
    %300 = vmatprep.subr.bf16.mxu0 0
    %301 = vmatpush1.bf16.xpose.msra.mxu0 0
    %302 = vmatprep.subr.bf16.mxu0 0
    %303 = vmatpush1.bf16.xpose.msra.mxu0 0
    %304 = vmatprep.subr.bf16.mxu0 0
    %305 = vmatpush1.bf16.xpose.msra.mxu0 %v288
    %306 = vmatprep.subr.bf16.mxu0 0
    %307 = vmatpush2.bf16.xpose.msra.mxu0 0
    %308 = vmatprep.subr.bf16.mxu0 0
    %309 = vmatpush2.bf16.xpose.msra.mxu0 0
    %310 = vmatprep.subr.bf16.mxu0 0
    %311 = vmatpush2.bf16.xpose.msra.mxu0 0
    %312 = vmatprep.subr.bf16.mxu0 0
    %313 = vmatpush2.bf16.xpose.msra.mxu0 0
    %314 = vmatprep.subr.bf16.mxu0 0
    %315 = vmatpush2.bf16.xpose.msra.mxu0 0
    %316 = vmatprep.subr.bf16.mxu0 0
    %317 = vmatpush2.bf16.xpose.msra.mxu0 0
    %318 = vmatprep.subr.bf16.mxu0 0
    %319 = vmatpush2.bf16.xpose.msra.mxu0 0
    %320 = vmatprep.subr.bf16.mxu0 0
    %321 = vmatpush2.bf16.xpose.msra.mxu0 0
    %322 = vmatprep.mubr.bf16.mxu0 0
    %323 = vmatmul.mubr.bf16.gmra.mxu0 %v285
    %v324 = vpop.f32.mrf.mxu0
    %v325 = vadd.f32 0.0, %v324
    %v326 = vpop.f32.mrf.mxu0
    %v327 = vpop.f32.mrf.mxu0
    %v328 = vpop.f32.mrf.mxu0
    %329 = vdwg.mxu0
    %v330 = vsel %vm234, %v276, -inf
    %331 = vmax.xlane.f32.xlu0 %v330
    %v332 = vpop.xlane.xlu0 %331
    %v333 = vsel %vm234, %v325, -inf
    %334 = vmax.xlane.f32.xlu0 %v333
    %v335 = vpop.xlane.xlu0 %334
    %v336 = vsub.f32 %v276, %v332
    %v337 = vsub.f32 %v325, %v335
    %v338 = vmul.f32 %v336, 1.442695
    %v339 = vpow.pop %v338
    %v340 = vmul.f32 %v337, 1.442695
    %v341 = vpow.pop %v340
    %v342 = vsel %vm234, %v339, 0.0
    %343 = vadd.xlane.f32.xlu0 %v342
    %v344 = vpop.xlane.xlu0 %343
    %v345 = vsel %vm234, %v341, 0.0
    %346 = vadd.xlane.f32.xlu0 %v345
    %v347 = vpop.xlane.xlu0 %346
    %v348 = vrcp.pop %v344
    %v349 = vmul.f32 %v339, %v348
    %v350 = vrcp.pop %v347
    %v351 = vmul.f32 %v341, %v350
    %v352 = vpack.c.bf16 %v349, %v349
    %v353 = vpack.c.bf16 %v351, %v351
    %355 = vrot.lane.b32.xlu0 %v229, 80
    %v356 = vpop.permute.xlu0 %355
    %v358 = vsel %vm234, %v352, 0
    %vm360 = vcmask 1043456
    %v362 = vsel %vm360, %v356, 0
    %364 = vmatprep.subr.bf16.mxu0 0
    %365 = vmatpush1.bf16.msra.mxu0 0
    %366 = vmatprep.subr.bf16.mxu0 0
    %367 = vmatpush1.bf16.msra.mxu0 0
    %368 = vmatprep.subr.bf16.mxu0 0
    %369 = vmatpush1.bf16.msra.mxu0 0
    %370 = vmatprep.subr.bf16.mxu0 0
    %371 = vmatpush1.bf16.msra.mxu0 0
    %372 = vmatprep.subr.bf16.mxu0 0
    %373 = vmatpush1.bf16.msra.mxu0 0
    %374 = vmatprep.subr.bf16.mxu0 0
    %375 = vmatpush1.bf16.msra.mxu0 0
    %376 = vmatprep.subr.bf16.mxu0 0
    %377 = vmatpush1.bf16.msra.mxu0 0
    %378 = vmatprep.subr.bf16.mxu0 0
    %379 = vmatpush1.bf16.msra.mxu0 %v362
    %380 = vmatprep.subr.bf16.mxu0 0
    %381 = vmatpush2.bf16.msra.mxu0 0
    %382 = vmatprep.subr.bf16.mxu0 0
    %383 = vmatpush2.bf16.msra.mxu0 0
    %384 = vmatprep.subr.bf16.mxu0 0
    %385 = vmatpush2.bf16.msra.mxu0 0
    %386 = vmatprep.subr.bf16.mxu0 0
    %387 = vmatpush2.bf16.msra.mxu0 0
    %388 = vmatprep.subr.bf16.mxu0 0
    %389 = vmatpush2.bf16.msra.mxu0 0
    %390 = vmatprep.subr.bf16.mxu0 0
    %391 = vmatpush2.bf16.msra.mxu0 0
    %392 = vmatprep.subr.bf16.mxu0 0
    %393 = vmatpush2.bf16.msra.mxu0 0
    %394 = vmatprep.subr.bf16.mxu0 0
    %395 = vmatpush2.bf16.msra.mxu0 0
    %396 = vmatprep.mubr.bf16.mxu0 0
    %397 = vmatmul.mubr.bf16.gmra.mxu0 %v358
    %v398 = vpop.f32.mrf.mxu0
    %v399 = vadd.f32 0.0, %v398
    %v400 = vpop.f32.mrf.mxu0
    %v401 = vpop.f32.mrf.mxu0
    %v402 = vpop.f32.mrf.mxu0
    %403 = vdwg.mxu0
    %405 = vrot.lane.b32.xlu0 %v230, 80
    %v406 = vpop.permute.xlu0 %405
    %v408 = vsel %vm234, %v353, 0
    %v411 = vsel %vm360, %v406, 0
    %413 = vmatprep.subr.bf16.mxu0 0
    %414 = vmatpush1.bf16.msra.mxu0 0
    %415 = vmatprep.subr.bf16.mxu0 0
    %416 = vmatpush1.bf16.msra.mxu0 0
    %417 = vmatprep.subr.bf16.mxu0 0
    %418 = vmatpush1.bf16.msra.mxu0 0
    %419 = vmatprep.subr.bf16.mxu0 0
    %420 = vmatpush1.bf16.msra.mxu0 0
    %421 = vmatprep.subr.bf16.mxu0 0
    %422 = vmatpush1.bf16.msra.mxu0 0
    %423 = vmatprep.subr.bf16.mxu0 0
    %424 = vmatpush1.bf16.msra.mxu0 0
    %425 = vmatprep.subr.bf16.mxu0 0
    %426 = vmatpush1.bf16.msra.mxu0 0
    %427 = vmatprep.subr.bf16.mxu0 0
    %428 = vmatpush1.bf16.msra.mxu0 %v411
    %429 = vmatprep.subr.bf16.mxu0 0
    %430 = vmatpush2.bf16.msra.mxu0 0
    %431 = vmatprep.subr.bf16.mxu0 0
    %432 = vmatpush2.bf16.msra.mxu0 0
    %433 = vmatprep.subr.bf16.mxu0 0
    %434 = vmatpush2.bf16.msra.mxu0 0
    %435 = vmatprep.subr.bf16.mxu0 0
    %436 = vmatpush2.bf16.msra.mxu0 0
    %437 = vmatprep.subr.bf16.mxu0 0
    %438 = vmatpush2.bf16.msra.mxu0 0
    %439 = vmatprep.subr.bf16.mxu0 0
    %440 = vmatpush2.bf16.msra.mxu0 0
    %441 = vmatprep.subr.bf16.mxu0 0
    %442 = vmatpush2.bf16.msra.mxu0 0
    %443 = vmatprep.subr.bf16.mxu0 0
    %444 = vmatpush2.bf16.msra.mxu0 0
    %445 = vmatprep.mubr.bf16.mxu0 0
    %446 = vmatmul.mubr.bf16.gmra.mxu0 %v408
    %v447 = vpop.f32.mrf.mxu0
    %v448 = vadd.f32 0.0, %v447
    %v449 = vpop.f32.mrf.mxu0
    %v450 = vpop.f32.mrf.mxu0
    %v451 = vpop.f32.mrf.mxu0
    %452 = vdwg.mxu0
    %454 = vrot.lane.b32.xlu0 %v225, 120
    %v455 = vpop.permute.xlu0 %454
    %v457 = vsel %vm234, %v455, 0
    %459 = vmatprep.subr.bf16.mxu0 0
    %460 = vmatpush1.bf16.xpose.msra.mxu0 0
    %461 = vmatprep.subr.bf16.mxu0 0
    %462 = vmatpush1.bf16.xpose.msra.mxu0 0
    %463 = vmatprep.subr.bf16.mxu0 0
    %464 = vmatpush1.bf16.xpose.msra.mxu0 0
    %465 = vmatprep.subr.bf16.mxu0 0
    %466 = vmatpush1.bf16.xpose.msra.mxu0 0
    %467 = vmatprep.subr.bf16.mxu0 0
    %468 = vmatpush1.bf16.xpose.msra.mxu0 0
    %469 = vmatprep.subr.bf16.mxu0 0
    %470 = vmatpush1.bf16.xpose.msra.mxu0 0
    %471 = vmatprep.subr.bf16.mxu0 0
    %472 = vmatpush1.bf16.xpose.msra.mxu0 0
    %473 = vmatprep.subr.bf16.mxu0 0
    %474 = vmatpush1.bf16.xpose.msra.mxu0 %v239
    %475 = vmatprep.subr.bf16.mxu0 0
    %476 = vmatpush2.bf16.xpose.msra.mxu0 0
    %477 = vmatprep.subr.bf16.mxu0 0
    %478 = vmatpush2.bf16.xpose.msra.mxu0 0
    %479 = vmatprep.subr.bf16.mxu0 0
    %480 = vmatpush2.bf16.xpose.msra.mxu0 0
    %481 = vmatprep.subr.bf16.mxu0 0
    %482 = vmatpush2.bf16.xpose.msra.mxu0 0
    %483 = vmatprep.subr.bf16.mxu0 0
    %484 = vmatpush2.bf16.xpose.msra.mxu0 0
    %485 = vmatprep.subr.bf16.mxu0 0
    %486 = vmatpush2.bf16.xpose.msra.mxu0 0
    %487 = vmatprep.subr.bf16.mxu0 0
    %488 = vmatpush2.bf16.xpose.msra.mxu0 0
    %489 = vmatprep.subr.bf16.mxu0 0
    %490 = vmatpush2.bf16.xpose.msra.mxu0 0
    %491 = vmatprep.mubr.bf16.mxu0 0
    %492 = vmatmul.mubr.bf16.gmra.mxu0 %v457
    %v493 = vpop.f32.mrf.mxu0
    %v494 = vadd.f32 0.0, %v493
    %v495 = vpop.f32.mrf.mxu0
    %v496 = vpop.f32.mrf.mxu0
    %v497 = vpop.f32.mrf.mxu0
    %498 = vdwg.mxu0
    %500 = vrot.lane.b32.xlu0 %v226, 120
    %v501 = vpop.permute.xlu0 %500
    %v503 = vsel %vm234, %v501, 0
    %505 = vmatprep.subr.bf16.mxu0 0
    %506 = vmatpush1.bf16.xpose.msra.mxu0 0
    %507 = vmatprep.subr.bf16.mxu0 0
    %508 = vmatpush1.bf16.xpose.msra.mxu0 0
    %509 = vmatprep.subr.bf16.mxu0 0
    %510 = vmatpush1.bf16.xpose.msra.mxu0 0
    %511 = vmatprep.subr.bf16.mxu0 0
    %512 = vmatpush1.bf16.xpose.msra.mxu0 0
    %513 = vmatprep.subr.bf16.mxu0 0
    %514 = vmatpush1.bf16.xpose.msra.mxu0 0
    %515 = vmatprep.subr.bf16.mxu0 0
    %516 = vmatpush1.bf16.xpose.msra.mxu0 0
    %517 = vmatprep.subr.bf16.mxu0 0
    %518 = vmatpush1.bf16.xpose.msra.mxu0 0
    %519 = vmatprep.subr.bf16.mxu0 0
    %520 = vmatpush1.bf16.xpose.msra.mxu0 %v288
    %521 = vmatprep.subr.bf16.mxu0 0
    %522 = vmatpush2.bf16.xpose.msra.mxu0 0
    %523 = vmatprep.subr.bf16.mxu0 0
    %524 = vmatpush2.bf16.xpose.msra.mxu0 0
    %525 = vmatprep.subr.bf16.mxu0 0
    %526 = vmatpush2.bf16.xpose.msra.mxu0 0
    %527 = vmatprep.subr.bf16.mxu0 0
    %528 = vmatpush2.bf16.xpose.msra.mxu0 0
    %529 = vmatprep.subr.bf16.mxu0 0
    %530 = vmatpush2.bf16.xpose.msra.mxu0 0
    %531 = vmatprep.subr.bf16.mxu0 0
    %532 = vmatpush2.bf16.xpose.msra.mxu0 0
    %533 = vmatprep.subr.bf16.mxu0 0
    %534 = vmatpush2.bf16.xpose.msra.mxu0 0
    %535 = vmatprep.subr.bf16.mxu0 0
    %536 = vmatpush2.bf16.xpose.msra.mxu0 0
    %537 = vmatprep.mubr.bf16.mxu0 0
    %538 = vmatmul.mubr.bf16.gmra.mxu0 %v503
    %v539 = vpop.f32.mrf.mxu0
    %v540 = vadd.f32 0.0, %v539
    %v541 = vpop.f32.mrf.mxu0
    %v542 = vpop.f32.mrf.mxu0
    %v543 = vpop.f32.mrf.mxu0
    %544 = vdwg.mxu0
    %v545 = vsel %vm234, %v494, -inf
    %546 = vmax.xlane.f32.xlu0 %v545
    %v547 = vpop.xlane.xlu0 %546
    %v548 = vsel %vm234, %v540, -inf
    %549 = vmax.xlane.f32.xlu0 %v548
    %v550 = vpop.xlane.xlu0 %549
    %v551 = vsub.f32 %v494, %v547
    %v552 = vsub.f32 %v540, %v550
    %v553 = vmul.f32 %v551, 1.442695
    %v554 = vpow.pop %v553
    %v555 = vmul.f32 %v552, 1.442695
    %v556 = vpow.pop %v555
    %v557 = vsel %vm234, %v554, 0.0
    %558 = vadd.xlane.f32.xlu0 %v557
    %v559 = vpop.xlane.xlu0 %558
    %v560 = vsel %vm234, %v556, 0.0
    %561 = vadd.xlane.f32.xlu0 %v560
    %v562 = vpop.xlane.xlu0 %561
    %v563 = vrcp.pop %v559
    %v564 = vmul.f32 %v554, %v563
    %v565 = vrcp.pop %v562
    %v566 = vmul.f32 %v556, %v565
    %v567 = vpack.c.bf16 %v564, %v564
    %v568 = vpack.c.bf16 %v566, %v566
    %v570 = vsel %vm234, %v567, 0
    %572 = vmatprep.subr.bf16.mxu0 0
    %573 = vmatpush1.bf16.msra.mxu0 0
    %574 = vmatprep.subr.bf16.mxu0 0
    %575 = vmatpush1.bf16.msra.mxu0 0
    %576 = vmatprep.subr.bf16.mxu0 0
    %577 = vmatpush1.bf16.msra.mxu0 0
    %578 = vmatprep.subr.bf16.mxu0 0
    %579 = vmatpush1.bf16.msra.mxu0 0
    %580 = vmatprep.subr.bf16.mxu0 0
    %581 = vmatpush1.bf16.msra.mxu0 0
    %582 = vmatprep.subr.bf16.mxu0 0
    %583 = vmatpush1.bf16.msra.mxu0 0
    %584 = vmatprep.subr.bf16.mxu0 0
    %585 = vmatpush1.bf16.msra.mxu0 0
    %586 = vmatprep.subr.bf16.mxu0 0
    %587 = vmatpush1.bf16.msra.mxu0 %v362
    %588 = vmatprep.subr.bf16.mxu0 0
    %589 = vmatpush2.bf16.msra.mxu0 0
    %590 = vmatprep.subr.bf16.mxu0 0
    %591 = vmatpush2.bf16.msra.mxu0 0
    %592 = vmatprep.subr.bf16.mxu0 0
    %593 = vmatpush2.bf16.msra.mxu0 0
    %594 = vmatprep.subr.bf16.mxu0 0
    %595 = vmatpush2.bf16.msra.mxu0 0
    %596 = vmatprep.subr.bf16.mxu0 0
    %597 = vmatpush2.bf16.msra.mxu0 0
    %598 = vmatprep.subr.bf16.mxu0 0
    %599 = vmatpush2.bf16.msra.mxu0 0
    %600 = vmatprep.subr.bf16.mxu0 0
    %601 = vmatpush2.bf16.msra.mxu0 0
    %602 = vmatprep.subr.bf16.mxu0 0
    %603 = vmatpush2.bf16.msra.mxu0 0
    %604 = vmatprep.mubr.bf16.mxu0 0
    %605 = vmatmul.mubr.bf16.gmra.mxu0 %v570
    %v606 = vpop.f32.mrf.mxu0
    %v607 = vadd.f32 0.0, %v606
    %v608 = vpop.f32.mrf.mxu0
    %v609 = vpop.f32.mrf.mxu0
    %v610 = vpop.f32.mrf.mxu0
    %611 = vdwg.mxu0
    %v613 = vsel %vm234, %v568, 0
    %615 = vmatprep.subr.bf16.mxu0 0
    %616 = vmatpush1.bf16.msra.mxu0 0
    %617 = vmatprep.subr.bf16.mxu0 0
    %618 = vmatpush1.bf16.msra.mxu0 0
    %619 = vmatprep.subr.bf16.mxu0 0
    %620 = vmatpush1.bf16.msra.mxu0 0
    %621 = vmatprep.subr.bf16.mxu0 0
    %622 = vmatpush1.bf16.msra.mxu0 0
    %623 = vmatprep.subr.bf16.mxu0 0
    %624 = vmatpush1.bf16.msra.mxu0 0
    %625 = vmatprep.subr.bf16.mxu0 0
    %626 = vmatpush1.bf16.msra.mxu0 0
    %627 = vmatprep.subr.bf16.mxu0 0
    %628 = vmatpush1.bf16.msra.mxu0 0
    %629 = vmatprep.subr.bf16.mxu0 0
    %630 = vmatpush1.bf16.msra.mxu0 %v411
    %631 = vmatprep.subr.bf16.mxu0 0
    %632 = vmatpush2.bf16.msra.mxu0 0
    %633 = vmatprep.subr.bf16.mxu0 0
    %634 = vmatpush2.bf16.msra.mxu0 0
    %635 = vmatprep.subr.bf16.mxu0 0
    %636 = vmatpush2.bf16.msra.mxu0 0
    %637 = vmatprep.subr.bf16.mxu0 0
    %638 = vmatpush2.bf16.msra.mxu0 0
    %639 = vmatprep.subr.bf16.mxu0 0
    %640 = vmatpush2.bf16.msra.mxu0 0
    %641 = vmatprep.subr.bf16.mxu0 0
    %642 = vmatpush2.bf16.msra.mxu0 0
    %643 = vmatprep.subr.bf16.mxu0 0
    %644 = vmatpush2.bf16.msra.mxu0 0
    %645 = vmatprep.subr.bf16.mxu0 0
    %646 = vmatpush2.bf16.msra.mxu0 0
    %647 = vmatprep.mubr.bf16.mxu0 0
    %648 = vmatmul.mubr.bf16.gmra.mxu0 %v613
    %v649 = vpop.f32.mrf.mxu0
    %v650 = vadd.f32 0.0, %v649
    %v651 = vpop.f32.mrf.mxu0
    %v652 = vpop.f32.mrf.mxu0
    %v653 = vpop.f32.mrf.mxu0
    %654 = vdwg.mxu0
    %655 = vrot.lane.b32.xlu0 %v225, 112
    %v656 = vpop.permute.xlu0 %655
    %657 = vrot.lane.b32.xlu0 %v227, 88
    %v658 = vpop.permute.xlu0 %657
    %v660 = vsel %vm234, %v656, 0
    %v663 = vsel %vm234, %v658, 0
    %665 = vmatprep.subr.bf16.mxu0 0
    %666 = vmatpush1.bf16.xpose.msra.mxu0 0
    %667 = vmatprep.subr.bf16.mxu0 0
    %668 = vmatpush1.bf16.xpose.msra.mxu0 0
    %669 = vmatprep.subr.bf16.mxu0 0
    %670 = vmatpush1.bf16.xpose.msra.mxu0 0
    %671 = vmatprep.subr.bf16.mxu0 0
    %672 = vmatpush1.bf16.xpose.msra.mxu0 0
    %673 = vmatprep.subr.bf16.mxu0 0
    %674 = vmatpush1.bf16.xpose.msra.mxu0 0
    %675 = vmatprep.subr.bf16.mxu0 0
    %676 = vmatpush1.bf16.xpose.msra.mxu0 0
    %677 = vmatprep.subr.bf16.mxu0 0
    %678 = vmatpush1.bf16.xpose.msra.mxu0 0
    %679 = vmatprep.subr.bf16.mxu0 0
    %680 = vmatpush1.bf16.xpose.msra.mxu0 %v663
    %681 = vmatprep.subr.bf16.mxu0 0
    %682 = vmatpush2.bf16.xpose.msra.mxu0 0
    %683 = vmatprep.subr.bf16.mxu0 0
    %684 = vmatpush2.bf16.xpose.msra.mxu0 0
    %685 = vmatprep.subr.bf16.mxu0 0
    %686 = vmatpush2.bf16.xpose.msra.mxu0 0
    %687 = vmatprep.subr.bf16.mxu0 0
    %688 = vmatpush2.bf16.xpose.msra.mxu0 0
    %689 = vmatprep.subr.bf16.mxu0 0
    %690 = vmatpush2.bf16.xpose.msra.mxu0 0
    %691 = vmatprep.subr.bf16.mxu0 0
    %692 = vmatpush2.bf16.xpose.msra.mxu0 0
    %693 = vmatprep.subr.bf16.mxu0 0
    %694 = vmatpush2.bf16.xpose.msra.mxu0 0
    %695 = vmatprep.subr.bf16.mxu0 0
    %696 = vmatpush2.bf16.xpose.msra.mxu0 0
    %697 = vmatprep.mubr.bf16.mxu0 0
    %698 = vmatmul.mubr.bf16.gmra.mxu0 %v660
    %v699 = vpop.f32.mrf.mxu0
    %v700 = vadd.f32 0.0, %v699
    %v701 = vpop.f32.mrf.mxu0
    %v702 = vpop.f32.mrf.mxu0
    %v703 = vpop.f32.mrf.mxu0
    %704 = vdwg.mxu0
    %705 = vrot.lane.b32.xlu0 %v226, 112
    %v706 = vpop.permute.xlu0 %705
    %707 = vrot.lane.b32.xlu0 %v228, 88
    %v708 = vpop.permute.xlu0 %707
    %v710 = vsel %vm234, %v706, 0
    %v713 = vsel %vm234, %v708, 0
    %715 = vmatprep.subr.bf16.mxu0 0
    %716 = vmatpush1.bf16.xpose.msra.mxu0 0
    %717 = vmatprep.subr.bf16.mxu0 0
    %718 = vmatpush1.bf16.xpose.msra.mxu0 0
    %719 = vmatprep.subr.bf16.mxu0 0
    %720 = vmatpush1.bf16.xpose.msra.mxu0 0
    %721 = vmatprep.subr.bf16.mxu0 0
    %722 = vmatpush1.bf16.xpose.msra.mxu0 0
    %723 = vmatprep.subr.bf16.mxu0 0
    %724 = vmatpush1.bf16.xpose.msra.mxu0 0
    %725 = vmatprep.subr.bf16.mxu0 0
    %726 = vmatpush1.bf16.xpose.msra.mxu0 0
    %727 = vmatprep.subr.bf16.mxu0 0
    %728 = vmatpush1.bf16.xpose.msra.mxu0 0
    %729 = vmatprep.subr.bf16.mxu0 0
    %730 = vmatpush1.bf16.xpose.msra.mxu0 %v713
    %731 = vmatprep.subr.bf16.mxu0 0
    %732 = vmatpush2.bf16.xpose.msra.mxu0 0
    %733 = vmatprep.subr.bf16.mxu0 0
    %734 = vmatpush2.bf16.xpose.msra.mxu0 0
    %735 = vmatprep.subr.bf16.mxu0 0
    %736 = vmatpush2.bf16.xpose.msra.mxu0 0
    %737 = vmatprep.subr.bf16.mxu0 0
    %738 = vmatpush2.bf16.xpose.msra.mxu0 0
    %739 = vmatprep.subr.bf16.mxu0 0
    %740 = vmatpush2.bf16.xpose.msra.mxu0 0
    %741 = vmatprep.subr.bf16.mxu0 0
    %742 = vmatpush2.bf16.xpose.msra.mxu0 0
    %743 = vmatprep.subr.bf16.mxu0 0
    %744 = vmatpush2.bf16.xpose.msra.mxu0 0
    %745 = vmatprep.subr.bf16.mxu0 0
    %746 = vmatpush2.bf16.xpose.msra.mxu0 0
    %747 = vmatprep.mubr.bf16.mxu0 0
    %748 = vmatmul.mubr.bf16.gmra.mxu0 %v710
    %v749 = vpop.f32.mrf.mxu0
    %v750 = vadd.f32 0.0, %v749
    %v751 = vpop.f32.mrf.mxu0
    %v752 = vpop.f32.mrf.mxu0
    %v753 = vpop.f32.mrf.mxu0
    %754 = vdwg.mxu0
    %v755 = vsel %vm234, %v700, -inf
    %756 = vmax.xlane.f32.xlu0 %v755
    %v757 = vpop.xlane.xlu0 %756
    %v758 = vsel %vm234, %v750, -inf
    %759 = vmax.xlane.f32.xlu0 %v758
    %v760 = vpop.xlane.xlu0 %759
    %v761 = vsub.f32 %v700, %v757
    %v762 = vsub.f32 %v750, %v760
    %v763 = vmul.f32 %v761, 1.442695
    %v764 = vpow.pop %v763
    %v765 = vmul.f32 %v762, 1.442695
    %v766 = vpow.pop %v765
    %v767 = vsel %vm234, %v764, 0.0
    %768 = vadd.xlane.f32.xlu0 %v767
    %v769 = vpop.xlane.xlu0 %768
    %v770 = vsel %vm234, %v766, 0.0
    %771 = vadd.xlane.f32.xlu0 %v770
    %v772 = vpop.xlane.xlu0 %771
    %v773 = vrcp.pop %v769
    %v774 = vmul.f32 %v764, %v773
    %v775 = vrcp.pop %v772
    %v776 = vmul.f32 %v766, %v775
    %v777 = vpack.c.bf16 %v774, %v774
    %v778 = vpack.c.bf16 %v776, %v776
    %779 = vrot.lane.b32.xlu0 %v229, 72
    %v780 = vpop.permute.xlu0 %779
    %v782 = vsel %vm234, %v777, 0
    %v785 = vsel %vm360, %v780, 0
    %787 = vmatprep.subr.bf16.mxu0 0
    %788 = vmatpush1.bf16.msra.mxu0 0
    %789 = vmatprep.subr.bf16.mxu0 0
    %790 = vmatpush1.bf16.msra.mxu0 0
    %791 = vmatprep.subr.bf16.mxu0 0
    %792 = vmatpush1.bf16.msra.mxu0 0
    %793 = vmatprep.subr.bf16.mxu0 0
    %794 = vmatpush1.bf16.msra.mxu0 0
    %795 = vmatprep.subr.bf16.mxu0 0
    %796 = vmatpush1.bf16.msra.mxu0 0
    %797 = vmatprep.subr.bf16.mxu0 0
    %798 = vmatpush1.bf16.msra.mxu0 0
    %799 = vmatprep.subr.bf16.mxu0 0
    %800 = vmatpush1.bf16.msra.mxu0 0
    %801 = vmatprep.subr.bf16.mxu0 0
    %802 = vmatpush1.bf16.msra.mxu0 %v785
    %803 = vmatprep.subr.bf16.mxu0 0
    %804 = vmatpush2.bf16.msra.mxu0 0
    %805 = vmatprep.subr.bf16.mxu0 0
    %806 = vmatpush2.bf16.msra.mxu0 0
    %807 = vmatprep.subr.bf16.mxu0 0
    %808 = vmatpush2.bf16.msra.mxu0 0
    %809 = vmatprep.subr.bf16.mxu0 0
    %810 = vmatpush2.bf16.msra.mxu0 0
    %811 = vmatprep.subr.bf16.mxu0 0
    %812 = vmatpush2.bf16.msra.mxu0 0
    %813 = vmatprep.subr.bf16.mxu0 0
    %814 = vmatpush2.bf16.msra.mxu0 0
    %815 = vmatprep.subr.bf16.mxu0 0
    %816 = vmatpush2.bf16.msra.mxu0 0
    %817 = vmatprep.subr.bf16.mxu0 0
    %818 = vmatpush2.bf16.msra.mxu0 0
    %819 = vmatprep.mubr.bf16.mxu0 0
    %820 = vmatmul.mubr.bf16.gmra.mxu0 %v782
    %v821 = vpop.f32.mrf.mxu0
    %v822 = vadd.f32 0.0, %v821
    %v823 = vpop.f32.mrf.mxu0
    %v824 = vpop.f32.mrf.mxu0
    %v825 = vpop.f32.mrf.mxu0
    %826 = vdwg.mxu0
    %827 = vrot.lane.b32.xlu0 %v230, 72
    %v828 = vpop.permute.xlu0 %827
    %v830 = vsel %vm234, %v778, 0
    %v833 = vsel %vm360, %v828, 0
    %835 = vmatprep.subr.bf16.mxu0 0
    %836 = vmatpush1.bf16.msra.mxu0 0
    %837 = vmatprep.subr.bf16.mxu0 0
    %838 = vmatpush1.bf16.msra.mxu0 0
    %839 = vmatprep.subr.bf16.mxu0 0
    %840 = vmatpush1.bf16.msra.mxu0 0
    %841 = vmatprep.subr.bf16.mxu0 0
    %842 = vmatpush1.bf16.msra.mxu0 0
    %843 = vmatprep.subr.bf16.mxu0 0
    %844 = vmatpush1.bf16.msra.mxu0 0
    %845 = vmatprep.subr.bf16.mxu0 0
    %846 = vmatpush1.bf16.msra.mxu0 0
    %847 = vmatprep.subr.bf16.mxu0 0
    %848 = vmatpush1.bf16.msra.mxu0 0
    %849 = vmatprep.subr.bf16.mxu0 0
    %850 = vmatpush1.bf16.msra.mxu0 %v833
    %851 = vmatprep.subr.bf16.mxu0 0
    %852 = vmatpush2.bf16.msra.mxu0 0
    %853 = vmatprep.subr.bf16.mxu0 0
    %854 = vmatpush2.bf16.msra.mxu0 0
    %855 = vmatprep.subr.bf16.mxu0 0
    %856 = vmatpush2.bf16.msra.mxu0 0
    %857 = vmatprep.subr.bf16.mxu0 0
    %858 = vmatpush2.bf16.msra.mxu0 0
    %859 = vmatprep.subr.bf16.mxu0 0
    %860 = vmatpush2.bf16.msra.mxu0 0
    %861 = vmatprep.subr.bf16.mxu0 0
    %862 = vmatpush2.bf16.msra.mxu0 0
    %863 = vmatprep.subr.bf16.mxu0 0
    %864 = vmatpush2.bf16.msra.mxu0 0
    %865 = vmatprep.subr.bf16.mxu0 0
    %866 = vmatpush2.bf16.msra.mxu0 0
    %867 = vmatprep.mubr.bf16.mxu0 0
    %868 = vmatmul.mubr.bf16.gmra.mxu0 %v830
    %v869 = vpop.f32.mrf.mxu0
    %v870 = vadd.f32 0.0, %v869
    %v871 = vpop.f32.mrf.mxu0
    %v872 = vpop.f32.mrf.mxu0
    %v873 = vpop.f32.mrf.mxu0
    %874 = vdwg.mxu0
    %875 = vrot.lane.b32.xlu0 %v225, 104
    %v876 = vpop.permute.xlu0 %875
    %v878 = vsel %vm234, %v876, 0
    %880 = vmatprep.subr.bf16.mxu0 0
    %881 = vmatpush1.bf16.xpose.msra.mxu0 0
    %882 = vmatprep.subr.bf16.mxu0 0
    %883 = vmatpush1.bf16.xpose.msra.mxu0 0
    %884 = vmatprep.subr.bf16.mxu0 0
    %885 = vmatpush1.bf16.xpose.msra.mxu0 0
    %886 = vmatprep.subr.bf16.mxu0 0
    %887 = vmatpush1.bf16.xpose.msra.mxu0 0
    %888 = vmatprep.subr.bf16.mxu0 0
    %889 = vmatpush1.bf16.xpose.msra.mxu0 0
    %890 = vmatprep.subr.bf16.mxu0 0
    %891 = vmatpush1.bf16.xpose.msra.mxu0 0
    %892 = vmatprep.subr.bf16.mxu0 0
    %893 = vmatpush1.bf16.xpose.msra.mxu0 0
    %894 = vmatprep.subr.bf16.mxu0 0
    %895 = vmatpush1.bf16.xpose.msra.mxu0 %v663
    %896 = vmatprep.subr.bf16.mxu0 0
    %897 = vmatpush2.bf16.xpose.msra.mxu0 0
    %898 = vmatprep.subr.bf16.mxu0 0
    %899 = vmatpush2.bf16.xpose.msra.mxu0 0
    %900 = vmatprep.subr.bf16.mxu0 0
    %901 = vmatpush2.bf16.xpose.msra.mxu0 0
    %902 = vmatprep.subr.bf16.mxu0 0
    %903 = vmatpush2.bf16.xpose.msra.mxu0 0
    %904 = vmatprep.subr.bf16.mxu0 0
    %905 = vmatpush2.bf16.xpose.msra.mxu0 0
    %906 = vmatprep.subr.bf16.mxu0 0
    %907 = vmatpush2.bf16.xpose.msra.mxu0 0
    %908 = vmatprep.subr.bf16.mxu0 0
    %909 = vmatpush2.bf16.xpose.msra.mxu0 0
    %910 = vmatprep.subr.bf16.mxu0 0
    %911 = vmatpush2.bf16.xpose.msra.mxu0 0
    %912 = vmatprep.mubr.bf16.mxu0 0
    %913 = vmatmul.mubr.bf16.gmra.mxu0 %v878
    %v914 = vpop.f32.mrf.mxu0
    %v915 = vadd.f32 0.0, %v914
    %v916 = vpop.f32.mrf.mxu0
    %v917 = vpop.f32.mrf.mxu0
    %v918 = vpop.f32.mrf.mxu0
    %919 = vdwg.mxu0
    %920 = vrot.lane.b32.xlu0 %v226, 104
    %v921 = vpop.permute.xlu0 %920
    %v923 = vsel %vm234, %v921, 0
    %925 = vmatprep.subr.bf16.mxu0 0
    %926 = vmatpush1.bf16.xpose.msra.mxu0 0
    %927 = vmatprep.subr.bf16.mxu0 0
    %928 = vmatpush1.bf16.xpose.msra.mxu0 0
    %929 = vmatprep.subr.bf16.mxu0 0
    %930 = vmatpush1.bf16.xpose.msra.mxu0 0
    %931 = vmatprep.subr.bf16.mxu0 0
    %932 = vmatpush1.bf16.xpose.msra.mxu0 0
    %933 = vmatprep.subr.bf16.mxu0 0
    %934 = vmatpush1.bf16.xpose.msra.mxu0 0
    %935 = vmatprep.subr.bf16.mxu0 0
    %936 = vmatpush1.bf16.xpose.msra.mxu0 0
    %937 = vmatprep.subr.bf16.mxu0 0
    %938 = vmatpush1.bf16.xpose.msra.mxu0 0
    %939 = vmatprep.subr.bf16.mxu0 0
    %940 = vmatpush1.bf16.xpose.msra.mxu0 %v713
    %941 = vmatprep.subr.bf16.mxu0 0
    %942 = vmatpush2.bf16.xpose.msra.mxu0 0
    %943 = vmatprep.subr.bf16.mxu0 0
    %944 = vmatpush2.bf16.xpose.msra.mxu0 0
    %945 = vmatprep.subr.bf16.mxu0 0
    %946 = vmatpush2.bf16.xpose.msra.mxu0 0
    %947 = vmatprep.subr.bf16.mxu0 0
    %948 = vmatpush2.bf16.xpose.msra.mxu0 0
    %949 = vmatprep.subr.bf16.mxu0 0
    %950 = vmatpush2.bf16.xpose.msra.mxu0 0
    %951 = vmatprep.subr.bf16.mxu0 0
    %952 = vmatpush2.bf16.xpose.msra.mxu0 0
    %953 = vmatprep.subr.bf16.mxu0 0
    %954 = vmatpush2.bf16.xpose.msra.mxu0 0
    %955 = vmatprep.subr.bf16.mxu0 0
    %956 = vmatpush2.bf16.xpose.msra.mxu0 0
    %957 = vmatprep.mubr.bf16.mxu0 0
    %958 = vmatmul.mubr.bf16.gmra.mxu0 %v923
    %v959 = vpop.f32.mrf.mxu0
    %v960 = vadd.f32 0.0, %v959
    %v961 = vpop.f32.mrf.mxu0
    %v962 = vpop.f32.mrf.mxu0
    %v963 = vpop.f32.mrf.mxu0
    %964 = vdwg.mxu0
    %v965 = vsel %vm234, %v915, -inf
    %966 = vmax.xlane.f32.xlu0 %v965
    %v967 = vpop.xlane.xlu0 %966
    %v968 = vsel %vm234, %v960, -inf
    %969 = vmax.xlane.f32.xlu0 %v968
    %v970 = vpop.xlane.xlu0 %969
    %v971 = vsub.f32 %v915, %v967
    %v972 = vsub.f32 %v960, %v970
    %v973 = vmul.f32 %v971, 1.442695
    %v974 = vpow.pop %v973
    %v975 = vmul.f32 %v972, 1.442695
    %v976 = vpow.pop %v975
    %v977 = vsel %vm234, %v974, 0.0
    %978 = vadd.xlane.f32.xlu0 %v977
    %v979 = vpop.xlane.xlu0 %978
    %v980 = vsel %vm234, %v976, 0.0
    %981 = vadd.xlane.f32.xlu0 %v980
    %v982 = vpop.xlane.xlu0 %981
    %v983 = vrcp.pop %v979
    %v984 = vmul.f32 %v974, %v983
    %v985 = vrcp.pop %v982
    %v986 = vmul.f32 %v976, %v985
    %v987 = vpack.c.bf16 %v984, %v984
    %v988 = vpack.c.bf16 %v986, %v986
    %v990 = vsel %vm234, %v987, 0
    %992 = vmatprep.subr.bf16.mxu0 0
    %993 = vmatpush1.bf16.msra.mxu0 0
    %994 = vmatprep.subr.bf16.mxu0 0
    %995 = vmatpush1.bf16.msra.mxu0 0
    %996 = vmatprep.subr.bf16.mxu0 0
    %997 = vmatpush1.bf16.msra.mxu0 0
    %998 = vmatprep.subr.bf16.mxu0 0
    %999 = vmatpush1.bf16.msra.mxu0 0
    %1000 = vmatprep.subr.bf16.mxu0 0
    %1001 = vmatpush1.bf16.msra.mxu0 0
    %1002 = vmatprep.subr.bf16.mxu0 0
    %1003 = vmatpush1.bf16.msra.mxu0 0
    %1004 = vmatprep.subr.bf16.mxu0 0
    %1005 = vmatpush1.bf16.msra.mxu0 0
    %1006 = vmatprep.subr.bf16.mxu0 0
    %1007 = vmatpush1.bf16.msra.mxu0 %v785
    %1008 = vmatprep.subr.bf16.mxu0 0
    %1009 = vmatpush2.bf16.msra.mxu0 0
    %1010 = vmatprep.subr.bf16.mxu0 0
    %1011 = vmatpush2.bf16.msra.mxu0 0
    %1012 = vmatprep.subr.bf16.mxu0 0
    %1013 = vmatpush2.bf16.msra.mxu0 0
    %1014 = vmatprep.subr.bf16.mxu0 0
    %1015 = vmatpush2.bf16.msra.mxu0 0
    %1016 = vmatprep.subr.bf16.mxu0 0
    %1017 = vmatpush2.bf16.msra.mxu0 0
    %1018 = vmatprep.subr.bf16.mxu0 0
    %1019 = vmatpush2.bf16.msra.mxu0 0
    %1020 = vmatprep.subr.bf16.mxu0 0
    %1021 = vmatpush2.bf16.msra.mxu0 0
    %1022 = vmatprep.subr.bf16.mxu0 0
    %1023 = vmatpush2.bf16.msra.mxu0 0
    %1024 = vmatprep.mubr.bf16.mxu0 0
    %1025 = vmatmul.mubr.bf16.gmra.mxu0 %v990
    %v1026 = vpop.f32.mrf.mxu0
    %v1027 = vadd.f32 0.0, %v1026
    %v1028 = vpop.f32.mrf.mxu0
    %v1029 = vpop.f32.mrf.mxu0
    %v1030 = vpop.f32.mrf.mxu0
    %1031 = vdwg.mxu0
    %v1033 = vsel %vm234, %v988, 0
    %1035 = vmatprep.subr.bf16.mxu0 0
    %1036 = vmatpush1.bf16.msra.mxu0 0
    %1037 = vmatprep.subr.bf16.mxu0 0
    %1038 = vmatpush1.bf16.msra.mxu0 0
    %1039 = vmatprep.subr.bf16.mxu0 0
    %1040 = vmatpush1.bf16.msra.mxu0 0
    %1041 = vmatprep.subr.bf16.mxu0 0
    %1042 = vmatpush1.bf16.msra.mxu0 0
    %1043 = vmatprep.subr.bf16.mxu0 0
    %1044 = vmatpush1.bf16.msra.mxu0 0
    %1045 = vmatprep.subr.bf16.mxu0 0
    %1046 = vmatpush1.bf16.msra.mxu0 0
    %1047 = vmatprep.subr.bf16.mxu0 0
    %1048 = vmatpush1.bf16.msra.mxu0 0
    %1049 = vmatprep.subr.bf16.mxu0 0
    %1050 = vmatpush1.bf16.msra.mxu0 %v833
    %1051 = vmatprep.subr.bf16.mxu0 0
    %1052 = vmatpush2.bf16.msra.mxu0 0
    %1053 = vmatprep.subr.bf16.mxu0 0
    %1054 = vmatpush2.bf16.msra.mxu0 0
    %1055 = vmatprep.subr.bf16.mxu0 0
    %1056 = vmatpush2.bf16.msra.mxu0 0
    %1057 = vmatprep.subr.bf16.mxu0 0
    %1058 = vmatpush2.bf16.msra.mxu0 0
    %1059 = vmatprep.subr.bf16.mxu0 0
    %1060 = vmatpush2.bf16.msra.mxu0 0
    %1061 = vmatprep.subr.bf16.mxu0 0
    %1062 = vmatpush2.bf16.msra.mxu0 0
    %1063 = vmatprep.subr.bf16.mxu0 0
    %1064 = vmatpush2.bf16.msra.mxu0 0
    %1065 = vmatprep.subr.bf16.mxu0 0
    %1066 = vmatpush2.bf16.msra.mxu0 0
    %1067 = vmatprep.mubr.bf16.mxu0 0
    %1068 = vmatmul.mubr.bf16.gmra.mxu0 %v1033
    %v1069 = vpop.f32.mrf.mxu0
    %v1070 = vadd.f32 0.0, %v1069
    %v1071 = vpop.f32.mrf.mxu0
    %v1072 = vpop.f32.mrf.mxu0
    %v1073 = vpop.f32.mrf.mxu0
    %1074 = vdwg.mxu0
    %1077 = vrot.lane.b32.xlu0 %v607, 8
    %v1078 = vpop.permute.xlu0 %1077
    %1079 = vrot.lane.b32.xlu0 %v650, 8
    %v1080 = vpop.permute.xlu0 %1079
    %1085 = vrot.lane.b32.xlu0 %v822, 16
    %v1086 = vpop.permute.xlu0 %1085
    %1087 = vrot.lane.b32.xlu0 %v870, 16
    %v1088 = vpop.permute.xlu0 %1087
    %1093 = vrot.lane.b32.xlu0 %v1027, 24
    %v1094 = vpop.permute.xlu0 %1093
    %1095 = vrot.lane.b32.xlu0 %v1070, 24
    %v1096 = vpop.permute.xlu0 %1095
    %v1099 = vsel %vm234, %v399, %v1078
    %v1100 = vsel %vm234, %v448, %v1080
    %vm1101 = vcmask 130048
    %v1102 = vsel %vm1101, %v1099, %v1086
    %v1103 = vsel %vm1101, %v1100, %v1088
    %vm1104 = vcmask 195584
    %v1105 = vsel %vm1104, %v1102, %v1094
    %v1106 = vsel %vm1104, %v1103, %v1096
    %v1107 = vpack.c.bf16 %v1106, %v1105
    %v1108 = vld [vmem:[%s3] sm:$0xf]
    %v1109 = vld [vmem:[%s3 + $0x4] sm:$0xf]
    %v1110 = vld [vmem:[%s3 + $0x8] sm:$0xf]
    %v1111 = vld [vmem:[%s3 + $0xc] sm:$0xf]
    %v1116 = vunpack.c.l.b16 %v1108
    %v1117 = vunpack.c.l.b16 %v1109
    %v1118 = vunpack.c.l.b16 %v1110
    %v1119 = vunpack.c.l.b16 %v1111
    %v1120 = vpack.c.b16 %v1117, %v1116
    %v1121 = vpack.c.b16 %v1119, %v1118
    %v1125 = vsel %vm41, %v1107, 0
    %1127 = vmatprep.subr.bf16.mxu0 0
    %1128 = vmatpush1.bf16.msra.mxu0 0
    %1129 = vmatprep.subr.bf16.mxu0 0
    %1130 = vmatpush1.bf16.msra.mxu0 0
    %1131 = vmatprep.subr.bf16.mxu0 0
    %1132 = vmatpush1.bf16.msra.mxu0 0
    %1133 = vmatprep.subr.bf16.mxu0 0
    %1134 = vmatpush1.bf16.msra.mxu0 0
    %1135 = vmatprep.subr.bf16.mxu0 0
    %1136 = vmatpush1.bf16.msra.mxu0 0
    %1137 = vmatprep.subr.bf16.mxu0 0
    %1138 = vmatpush1.bf16.msra.mxu0 0
    %1139 = vmatprep.subr.bf16.mxu0 0
    %1140 = vmatpush1.bf16.msra.mxu0 %v1121
    %1141 = vmatprep.subr.bf16.mxu0 0
    %1142 = vmatpush1.bf16.msra.mxu0 %v1120
    %1143 = vmatprep.subr.bf16.mxu0 0
    %1144 = vmatpush2.bf16.msra.mxu0 0
    %1145 = vmatprep.subr.bf16.mxu0 0
    %1146 = vmatpush2.bf16.msra.mxu0 0
    %1147 = vmatprep.subr.bf16.mxu0 0
    %1148 = vmatpush2.bf16.msra.mxu0 0
    %1149 = vmatprep.subr.bf16.mxu0 0
    %1150 = vmatpush2.bf16.msra.mxu0 0
    %1151 = vmatprep.subr.bf16.mxu0 0
    %1152 = vmatpush2.bf16.msra.mxu0 0
    %1153 = vmatprep.subr.bf16.mxu0 0
    %1154 = vmatpush2.bf16.msra.mxu0 0
    %1155 = vmatprep.subr.bf16.mxu0 0
    %1156 = vmatpush2.bf16.msra.mxu0 0
    %1157 = vmatprep.subr.bf16.mxu0 0
    %1158 = vmatpush2.bf16.msra.mxu0 0
    %1159 = vmatprep.mubr.bf16.mxu0 0
    %1160 = vmatmul.mubr.bf16.gmra.mxu0 %v1125
    %v1161 = vpop.f32.mrf.mxu0
    %v1162 = vadd.f32 0.0, %v1161
    %v1163 = vpop.f32.mrf.mxu0
    %v1164 = vpop.f32.mrf.mxu0
    %v1165 = vadd.f32 0.0, %v1164
    %v1166 = vpop.f32.mrf.mxu0
    %1167 = vdwg.mxu0
    %v1168 = vadd.f32 %v28, %v1162
    %v1169 = vadd.f32 %v29, %v1165
    %v1170 = vmul.f32 %v1168, %v1168
    %v1171 = vmul.f32 %v1169, %v1169
    %v1172 = vsel %vm41, %v1170, 0.0
    %1173 = vadd.xlane.f32.xlu0 %v1172
    %v1174 = vpop.xlane.xlu0 %1173
    %v1175 = vsel %vm41, %v1171, 0.0
    %1176 = vadd.xlane.f32.xlu0 %v1175
    %v1177 = vpop.xlane.xlu0 %1176
    %v1178 = vmul.f32 %v1174, %v48
    %v1179 = vmul.f32 %v1177, %v48
    %v1180 = vadd.f32 %v1178, 1e-05
    %v1181 = vadd.f32 %v1179, 1e-05
    %v1182 = vrsqrt.pop %v1180
    %v1183 = vrsqrt.pop %v1181
    %v1184 = vmul.f32 %v1168, %v1182
    %v1185 = vmul.f32 %v1169, %v1183
    %v1186 = vlaneseq
    %v1187 = vshrl.u32 %v1186, 7
    %v1188 = vsub.s32 1, %v1187
    %v1189 = vrot.slane %v30, %v1188
    %v1190 = vmul.f32 %v1184, %v1189
    %v1191 = vmul.f32 %v1185, %v1189
    %v1192 = vpack.c.bf16 %v1191, %v1190
    %v1193 = vld [vmem:[%s4] sm:$0xf]
    %v1194 = vld [vmem:[%s4 + $0x4] sm:$0xf]
    %v1195 = vld [vmem:[%s4 + $0x8] sm:$0xf]
    %v1196 = vld [vmem:[%s4 + $0xc] sm:$0xf]
    %v1201 = vunpack.c.l.b16 %v1193
    %v1202 = vunpack.c.l.b16 %v1194
    %v1203 = vunpack.c.l.b16 %v1195
    %v1204 = vunpack.c.l.b16 %v1196
    %v1205 = vpack.c.b16 %v1202, %v1201
    %v1206 = vpack.c.b16 %v1204, %v1203
    %v1210 = vsel %vm41, %v1192, 0
    %1212 = vmatprep.subr.bf16.mxu0 0
    %1213 = vmatpush1.bf16.msra.mxu0 0
    %1214 = vmatprep.subr.bf16.mxu0 0
    %1215 = vmatpush1.bf16.msra.mxu0 0
    %1216 = vmatprep.subr.bf16.mxu0 0
    %1217 = vmatpush1.bf16.msra.mxu0 0
    %1218 = vmatprep.subr.bf16.mxu0 0
    %1219 = vmatpush1.bf16.msra.mxu0 0
    %1220 = vmatprep.subr.bf16.mxu0 0
    %1221 = vmatpush1.bf16.msra.mxu0 0
    %1222 = vmatprep.subr.bf16.mxu0 0
    %1223 = vmatpush1.bf16.msra.mxu0 0
    %1224 = vmatprep.subr.bf16.mxu0 0
    %1225 = vmatpush1.bf16.msra.mxu0 %v1206
    %1226 = vmatprep.subr.bf16.mxu0 0
    %1227 = vmatpush1.bf16.msra.mxu0 %v1205
    %1228 = vmatprep.subr.bf16.mxu0 0
    %1229 = vmatpush2.bf16.msra.mxu0 0
    %1230 = vmatprep.subr.bf16.mxu0 0
    %1231 = vmatpush2.bf16.msra.mxu0 0
    %1232 = vmatprep.subr.bf16.mxu0 0
    %1233 = vmatpush2.bf16.msra.mxu0 0
    %1234 = vmatprep.subr.bf16.mxu0 0
    %1235 = vmatpush2.bf16.msra.mxu0 0
    %1236 = vmatprep.subr.bf16.mxu0 0
    %1237 = vmatpush2.bf16.msra.mxu0 0
    %1238 = vmatprep.subr.bf16.mxu0 0
    %1239 = vmatpush2.bf16.msra.mxu0 0
    %1240 = vmatprep.subr.bf16.mxu0 0
    %1241 = vmatpush2.bf16.msra.mxu0 0
    %1242 = vmatprep.subr.bf16.mxu0 0
    %1243 = vmatpush2.bf16.msra.mxu0 0
    %1244 = vmatprep.mubr.bf16.mxu0 0
    %1245 = vmatmul.mubr.bf16.gmra.mxu0 %v1210
    %v1246 = vpop.f32.mrf.mxu0
    %v1247 = vadd.f32 0.0, %v1246
    %v1248 = vpop.f32.mrf.mxu0
    %v1249 = vpop.f32.mrf.mxu0
    %v1250 = vadd.f32 0.0, %v1249
    %v1251 = vpop.f32.mrf.mxu0
    %1252 = vdwg.mxu0
    %v1253 = vxor.u32 %v1247, 2147483648
    %v1254 = vxor.u32 %v1250, 2147483648
    %v1255 = vmul.f32 %v1253, 1.442695
    %v1256 = vpow.pop %v1255
    %v1257 = vmul.f32 %v1254, 1.442695
    %v1258 = vpow.pop %v1257
    %v1259 = vadd.f32 %v1256, 1.0
    %v1260 = vadd.f32 %v1258, 1.0
    %v1261 = vrcp.pop %v1259
    %v1262 = vmul.f32 1.0, %v1261
    %v1263 = vrcp.pop %v1260
    %v1264 = vmul.f32 1.0, %v1263
    %v1265 = vmul.f32 %v1247, %v1262
    %v1266 = vmul.f32 %v1250, %v1264
    %1269 = vrot.lane.b32.xlu0 %v1247, 64
    %v1270 = vpop.permute.xlu0 %1269
    %1271 = vrot.lane.b32.xlu0 %v1250, 64
    %v1272 = vpop.permute.xlu0 %1271
    %v1275 = vmul.f32 %v1265, %v1270
    %v1276 = vmul.f32 %v1266, %v1272
    %v1277 = vpack.c.bf16 %v1276, %v1275
    %v1278 = vld [vmem:[%s5] sm:$0xf]
    %v1279 = vld [vmem:[%s5 + $0x4] sm:$0xf]
    %v1280 = vld [vmem:[%s5 + $0x8] sm:$0xf]
    %v1281 = vld [vmem:[%s5 + $0xc] sm:$0xf]
    %v1282 = vld [vmem:[%s5 + $0x10] sm:$0xf]
    %v1283 = vld [vmem:[%s5 + $0x14] sm:$0xf]
    %v1284 = vld [vmem:[%s5 + $0x18] sm:$0xf]
    %v1285 = vld [vmem:[%s5 + $0x1c] sm:$0xf]
    %v1294 = vunpack.c.l.b16 %v1278
    %v1295 = vunpack.c.l.b16 %v1279
    %v1296 = vunpack.c.l.b16 %v1280
    %v1297 = vunpack.c.l.b16 %v1281
    %v1298 = vunpack.c.l.b16 %v1282
    %v1299 = vunpack.c.l.b16 %v1283
    %v1300 = vunpack.c.l.b16 %v1284
    %v1301 = vunpack.c.l.b16 %v1285
    %v1302 = vpack.c.b16 %v1295, %v1294
    %v1303 = vpack.c.b16 %v1297, %v1296
    %v1304 = vpack.c.b16 %v1299, %v1298
    %v1305 = vpack.c.b16 %v1301, %v1300
    %vm1310 = vcmask 523264
    %v1312 = vsel %vm1310, %v1277, 0
    %1314 = vmatprep.subr.bf16.mxu0 0
    %1315 = vmatpush1.bf16.msra.mxu0 0
    %1316 = vmatprep.subr.bf16.mxu0 0
    %1317 = vmatpush1.bf16.msra.mxu0 0
    %1318 = vmatprep.subr.bf16.mxu0 0
    %1319 = vmatpush1.bf16.msra.mxu0 0
    %1320 = vmatprep.subr.bf16.mxu0 0
    %1321 = vmatpush1.bf16.msra.mxu0 0
    %1322 = vmatprep.subr.bf16.mxu0 0
    %1323 = vmatpush1.bf16.msra.mxu0 %v1305
    %1324 = vmatprep.subr.bf16.mxu0 0
    %1325 = vmatpush1.bf16.msra.mxu0 %v1304
    %1326 = vmatprep.subr.bf16.mxu0 0
    %1327 = vmatpush1.bf16.msra.mxu0 %v1303
    %1328 = vmatprep.subr.bf16.mxu0 0
    %1329 = vmatpush1.bf16.msra.mxu0 %v1302
    %1330 = vmatprep.subr.bf16.mxu0 0
    %1331 = vmatpush2.bf16.msra.mxu0 0
    %1332 = vmatprep.subr.bf16.mxu0 0
    %1333 = vmatpush2.bf16.msra.mxu0 0
    %1334 = vmatprep.subr.bf16.mxu0 0
    %1335 = vmatpush2.bf16.msra.mxu0 0
    %1336 = vmatprep.subr.bf16.mxu0 0
    %1337 = vmatpush2.bf16.msra.mxu0 0
    %1338 = vmatprep.subr.bf16.mxu0 0
    %1339 = vmatpush2.bf16.msra.mxu0 0
    %1340 = vmatprep.subr.bf16.mxu0 0
    %1341 = vmatpush2.bf16.msra.mxu0 0
    %1342 = vmatprep.subr.bf16.mxu0 0
    %1343 = vmatpush2.bf16.msra.mxu0 0
    %1344 = vmatprep.subr.bf16.mxu0 0
    %1345 = vmatpush2.bf16.msra.mxu0 0
    %1346 = vmatprep.mubr.bf16.mxu0 0
    %1347 = vmatmul.mubr.bf16.gmra.mxu0 %v1312
    %v1348 = vpop.f32.mrf.mxu0
    %v1349 = vadd.f32 0.0, %v1348
    %v1350 = vpop.f32.mrf.mxu0
    %v1351 = vpop.f32.mrf.mxu0
    %v1352 = vadd.f32 0.0, %v1351
    %v1353 = vpop.f32.mrf.mxu0
    %1354 = vdwg.mxu0
    %v1355 = vadd.f32 %v1168, %v1349
    %v1356 = vadd.f32 %v1169, %v1352
    %1357 = vst.msk [vmem:[#allocation2] sm:$0xff] %vm41, %v1355
    %1358 = vst.msk [vmem:[#allocation2 + $0x8] sm:$0xff] %vm41, %v1356
    // Predicated region
    $region30: #{llama_decoder_layer.1} parent=1 // pred_check
      _
    $region31: #{llama_decoder_layer.1} parent=1 // pred_check_branch
      %1360 = sbr.rel (0) target = $region33
    $region32: #{llama_decoder_layer.1} parent=1 // pred_region
      %s1362 = ssub.s32 256, 256
      %1363 = vsyncadd [#allocation3], %s1362
      %s1364 = sshll.u32 [#allocation2], 4
      %s1365 = int_to_ptr.vmem [resolvable:$true] %s1364
      %1370 = dma.vmem_to_hbm [thread:$0]  %s1365, 256, %s7, [#allocation3], 128, 128, 8
    $region33: #{llama_decoder_layer.1} parent=1 // pred_fallthru
      _
    // Predicated region
    $region34: #{llama_decoder_layer.1} parent=1 // pred_check
      _
    $region35: #{llama_decoder_layer.1} parent=1 // pred_check_branch
      %1372 = sbr.rel (0) target = $region37
    $region36: #{llama_decoder_layer.1} parent=1 // pred_region
      %1373 = dma.done [#allocation3], 256
    $region37: #{llama_decoder_layer.1} parent=1 // pred_fallthru
      _
    %1374 = vsyncpa [#allocation3], 1

</llo_original>
